<compile_context>
chip_gen: v5e
topology: v5e:2x2
jax: 0.10.0
libtpu: 0.0.40
codegen_flags: <defaults>
</compile_context>

<pallas_src>
import functools
import math

import jax
import jax.numpy as jnp
from jax.experimental import pallas as pl
from jax.experimental.pallas import tpu as pltpu

VMEM_LIMIT = 32 * 1024 * 1024  # explicit scoped-VMEM budget, safe on v5e/v6e/v7x


def _pick_tile(dim, cap, align):
    """Largest divisor of `dim` that is <= cap and a multiple of `align`.
    Falls back to the full dimension (always satisfies the (8,128) rule)."""
    if dim <= cap:
        return dim
    for t in range(cap, 0, -1):
        if dim % t == 0 and t % align == 0:
            return t
    return dim


# ---------------------------------------------------------------------------
# Tiled linear:  out[M, N] = x[M, K] @ w[K, N] + b[N]
# ---------------------------------------------------------------------------
def linear_kernel(x_ref, w_ref, b_ref, o_ref, acc_ref):
    kk = pl.program_id(2)

    @pl.when(kk == 0)
    def _():
        acc_ref[...] = jnp.zeros(acc_ref.shape, acc_ref.dtype)

    acc_ref[...] += jnp.dot(
        x_ref[...], w_ref[...], preferred_element_type=jnp.float32
    )

    @pl.when(kk == pl.num_programs(2) - 1)
    def _():
        o_ref[...] = (acc_ref[...] + b_ref[...].astype(jnp.float32)).astype(o_ref.dtype)


def linear(x2d, w, b, *, tm_cap=256, tn_cap=512, tk_cap=512):
    M, K = x2d.shape
    _, N = w.shape
    tm = _pick_tile(M, tm_cap, 8)
    tn = _pick_tile(N, tn_cap, 128)
    tk = _pick_tile(K, tk_cap, 128)
    b2 = b.reshape(1, N)

    return pl.pallas_call(
        linear_kernel,
        out_shape=jax.ShapeDtypeStruct((M, N), x2d.dtype),
        grid_spec=pltpu.PrefetchScalarGridSpec(
            num_scalar_prefetch=0,
            grid=(M // tm, N // tn, K // tk),
            in_specs=[
                pl.BlockSpec((tm, tk), lambda i, j, k: (i, k)),   # x tile
                pl.BlockSpec((tk, tn), lambda i, j, k: (k, j)),   # weight slice (streamed)
                pl.BlockSpec((1, tn), lambda i, j, k: (0, j)),    # bias slice
            ],
            out_specs=pl.BlockSpec((tm, tn), lambda i, j, k: (i, j)),
            scratch_shapes=[pltpu.VMEM((tm, tn), jnp.float32)],
        ),
        compiler_params=pltpu.CompilerParams(
            dimension_semantics=("parallel", "parallel", "arbitrary"),
            vmem_limit_bytes=VMEM_LIMIT,
        ),
    )(x2d, w, b2)


# ---------------------------------------------------------------------------
# RoPE (rotary position embedding), applied per head on half-split features.
#   out_a = xa * cos - xb * sin ;  out_b = xb * cos + xa * sin
# which equals  x * cos + rotate_half(x) * sin  since cos/sin = cat(c, c)/cat(s, s).
# The half split/concat is done in the wrapper so the kernel is purely elementwise.
# ---------------------------------------------------------------------------
def rope_kernel(xa_ref, xb_ref, cos_ref, sin_ref, oa_ref, ob_ref):
    xa = xa_ref[...].astype(jnp.float32)
    xb = xb_ref[...].astype(jnp.float32)
    c = cos_ref[...].astype(jnp.float32)
    s = sin_ref[...].astype(jnp.float32)
    oa_ref[...] = (xa * c - xb * s).astype(oa_ref.dtype)
    ob_ref[...] = (xb * c + xa * s).astype(ob_ref.dtype)


def apply_rope(x, cos_h, sin_h, *, ts_cap=512):
    """x: [B*H, S, D]; cos_h/sin_h: [S, D//2] (first half of the rotary cache)."""
    BH, S, D = x.shape
    Dh = D // 2
    xa = x[..., :Dh]
    xb = x[..., Dh:]
    ts = _pick_tile(S, ts_cap, 8)

    oa, ob = pl.pallas_call(
        rope_kernel,
        out_shape=(
            jax.ShapeDtypeStruct((BH, S, Dh), x.dtype),
            jax.ShapeDtypeStruct((BH, S, Dh), x.dtype),
        ),
        grid_spec=pltpu.PrefetchScalarGridSpec(
            num_scalar_prefetch=0,
            grid=(BH, S // ts),
            in_specs=[
                pl.BlockSpec((None, ts, Dh), lambda b, si: (b, si, 0)),
                pl.BlockSpec((None, ts, Dh), lambda b, si: (b, si, 0)),
                pl.BlockSpec((ts, Dh), lambda b, si: (si, 0)),
                pl.BlockSpec((ts, Dh), lambda b, si: (si, 0)),
            ],
            out_specs=(
                pl.BlockSpec((None, ts, Dh), lambda b, si: (b, si, 0)),
                pl.BlockSpec((None, ts, Dh), lambda b, si: (b, si, 0)),
            ),
        ),
        compiler_params=pltpu.CompilerParams(
            dimension_semantics=("parallel", "parallel"),
            vmem_limit_bytes=VMEM_LIMIT,
        ),
    )(xa, xb, cos_h, sin_h)
    return jnp.concatenate([oa, ob], axis=-1)


# ---------------------------------------------------------------------------
# Flash attention: out = softmax(q k^T * scale) v  with online softmax.
# q/k/v: [B*H, S, D]; grid = (batch*head, q_tiles, kv_tiles); kv axis is reduction.
# ---------------------------------------------------------------------------
def flash_attn_kernel(q_ref, k_ref, v_ref, o_ref, m_sc, l_sc, acc_sc, *, scale):
    ki = pl.program_id(2)

    @pl.when(ki == 0)
    def _():
        m_sc[...] = jnp.full(m_sc.shape, -jnp.inf, dtype=m_sc.dtype)
        l_sc[...] = jnp.zeros(l_sc.shape, l_sc.dtype)
        acc_sc[...] = jnp.zeros(acc_sc.shape, acc_sc.dtype)

    q = q_ref[...]
    k = k_ref[...]
    # scores = q @ k^T  (contract head_dim of both; f32 accumulate on the MXU)
    s = jax.lax.dot_general(
        q, k, (((1,), (1,)), ((), ())), preferred_element_type=jnp.float32
    ) * scale                                            # (tq, tkv)
    # TODO(synk): additive attention_mask (+ finfo.min clamp) would be folded in here.

    m_prev = m_sc[...]
    m_new = jnp.maximum(m_prev, s.max(axis=-1, keepdims=True))
    alpha = jnp.exp(m_prev - m_new)
    p = jnp.exp(s - m_new)
    l_sc[...] = alpha * l_sc[...] + p.sum(axis=-1, keepdims=True)
    acc_sc[...] = alpha * acc_sc[...] + jnp.dot(
        p.astype(v_ref.dtype), v_ref[...], preferred_element_type=jnp.float32
    )
    m_sc[...] = m_new

    @pl.when(ki == pl.num_programs(2) - 1)
    def _():
        o_ref[...] = (acc_sc[...] / l_sc[...]).astype(o_ref.dtype)


def flash_attention(q, k, v, *, tq_cap=256, tkv_cap=256):
    BH, S, D = q.shape
    Skv = k.shape[1]
    tq = _pick_tile(S, tq_cap, 8)
    tkv = _pick_tile(Skv, tkv_cap, 8)
    scale = 1.0 / math.sqrt(D)
    kernel = functools.partial(flash_attn_kernel, scale=scale)

    return pl.pallas_call(
        kernel,
        out_shape=jax.ShapeDtypeStruct((BH, S, D), q.dtype),
        grid_spec=pltpu.PrefetchScalarGridSpec(
            num_scalar_prefetch=0,
            grid=(BH, S // tq, Skv // tkv),
            in_specs=[
                pl.BlockSpec((None, tq, D), lambda b, qi, ki: (b, qi, 0)),
                pl.BlockSpec((None, tkv, D), lambda b, qi, ki: (b, ki, 0)),
                pl.BlockSpec((None, tkv, D), lambda b, qi, ki: (b, ki, 0)),
            ],
            out_specs=pl.BlockSpec((None, tq, D), lambda b, qi, ki: (b, qi, 0)),
            scratch_shapes=[
                pltpu.VMEM((tq, 1), jnp.float32),   # running max
                pltpu.VMEM((tq, 1), jnp.float32),   # running denom
                pltpu.VMEM((tq, D), jnp.float32),   # output accumulator
            ],
        ),
        compiler_params=pltpu.CompilerParams(
            dimension_semantics=("parallel", "parallel", "arbitrary"),
            vmem_limit_bytes=VMEM_LIMIT,
        ),
    )(q, k, v)


# ---------------------------------------------------------------------------
# Full LlamaAttention forward.
# ---------------------------------------------------------------------------
@functools.partial(jax.jit, static_argnames=("num_heads",))
def llama_attention(hidden_states, wq, bq, wk, bk, wv, bv, wo, bo,
                    cos_cache, sin_cache, position_ids, *, num_heads):
    """hidden_states: [B, S, H]; weights pre-transposed [in, out]; biases [out].
    Returns attn_output [B, S, H] (attn_weights / past_key_value not returned).
    """
    # TODO(synk): past_key_value concat / use_cache and output_attentions paths
    # are not implemented (no-cache, mask=None forward path only).
    B, S, H = hidden_states.shape
    D = H // num_heads
    x2d = hidden_states.reshape(B * S, H)

    q = linear(x2d, wq, bq)
    k = linear(x2d, wk, bk)
    v = linear(x2d, wv, bv)

    def to_heads(t):
        return (t.reshape(B, S, num_heads, D)
                 .transpose(0, 2, 1, 3)
                 .reshape(B * num_heads, S, D))

    qh, kh, vh = to_heads(q), to_heads(k), to_heads(v)

    # Gather rotary tables at position_ids (cos/sin = cat(c, c): keep first half).
    cos = jnp.take(cos_cache, position_ids, axis=0)    # [S, D]
    sin = jnp.take(sin_cache, position_ids, axis=0)
    Dh = D // 2
    cos_h, sin_h = cos[:, :Dh], sin[:, :Dh]

    qh = apply_rope(qh, cos_h, sin_h)
    kh = apply_rope(kh, cos_h, sin_h)

    attn = flash_attention(qh, kh, vh)                 # [B*nh, S, D]

    attn = (attn.reshape(B, num_heads, S, D)
                .transpose(0, 2, 1, 3)
                .reshape(B * S, H))
    out = linear(attn, wo, bo)
    return out.reshape(B, S, H)


# ---------------------------------------------------------------------------
# Pure-JAX reference mirroring the PyTorch forward.
# ---------------------------------------------------------------------------
def _rotate_half(x):
    d = x.shape[-1]
    return jnp.concatenate([-x[..., d // 2:], x[..., : d // 2]], axis=-1)


def reference_attention(x, wq, bq, wk, bk, wv, bv, wo, bo,
                        cos_cache, sin_cache, position_ids, num_heads):
    B, S, H = x.shape
    D = H // num_heads
    q = x @ wq + bq
    k = x @ wk + bk
    v = x @ wv + bv

    def split(t):
        return t.reshape(B, S, num_heads, D).transpose(0, 2, 1, 3)

    q, k, v = split(q), split(k), split(v)
    cos = cos_cache[position_ids][None, None]          # [1, 1, S, D]
    sin = sin_cache[position_ids][None, None]
    q = q * cos + _rotate_half(q) * sin
    k = k * cos + _rotate_half(k) * sin
    w = jnp.einsum("bhqd,bhkd->bhqk", q, k) / math.sqrt(D)
    w = jax.nn.softmax(w.astype(jnp.float32), axis=-1).astype(q.dtype)
    o = jnp.einsum("bhqk,bhkd->bhqd", w, v)
    o = o.transpose(0, 2, 1, 3).reshape(B, S, H)
    return o @ wo + bo


if __name__ == "__main__":
    # Small shapes consistent with the module: batch=2, seq=8, hidden=32, heads=4.
    B, S, H, NH = 2, 8, 32, 4
    D = H // NH
    MAX_POS = 64

    key = jax.random.PRNGKey(0)
    kx, kq, kk_, kv_, ko, kbq, kbk, kbv, kbo = jax.random.split(key, 9)

    x = jax.random.normal(kx, (B, S, H), dtype=jnp.float32)

    scale = 1.0 / math.sqrt(H)
    def init(k, shape):
        return jax.random.uniform(k, shape, jnp.float32, -scale, scale)

    wq, wk, wv, wo = init(kq, (H, H)), init(kk_, (H, H)), init(kv_, (H, H)), init(ko, (H, H))
    bq, bk, bv, bo = init(kbq, (H,)), init(kbk, (H,)), init(kbv, (H,)), init(kbo, (H,))

    # Rotary cache (mirrors LlamaRotaryEmbedding buffers, base=10000).
    inv_freq = 1.0 / (10000.0 ** (jnp.arange(0, D, 2, dtype=jnp.float32) / D))
    t = jnp.arange(MAX_POS, dtype=jnp.float32)
    freqs = jnp.einsum("i,j->ij", t, inv_freq)
    emb = jnp.concatenate([freqs, freqs], axis=-1)
    cos_cache = jnp.cos(emb)                           # [MAX_POS, D]
    sin_cache = jnp.sin(emb)

    position_ids = jnp.arange(S, dtype=jnp.int32)

    out = llama_attention(x, wq, bq, wk, bk, wv, bv, wo, bo,
                          cos_cache, sin_cache, position_ids, num_heads=NH)
    out = jax.block_until_ready(out)

    ref = reference_attention(x, wq, bq, wk, bk, wv, bv, wo, bo,
                              cos_cache, sin_cache, position_ids, NH)
    assert out.shape == (B, S, H)
    assert jnp.allclose(out, ref, atol=2e-3, rtol=2e-3), "mismatch vs reference"
    print("KERNEL_OK")
</pallas_src>

<mosaic_0001>
module attributes {stable_mosaic.version = 11 : i64} {
  func.func @linear_kernel(%arg0: i32, %arg1: i32, %arg2: i32, %arg3: memref<16x32xf32, #tpu.memory_space<vmem>>, %arg4: memref<32x32xf32, #tpu.memory_space<vmem>>, %arg5: memref<1x32xf32, #tpu.memory_space<vmem>>, %arg6: memref<16x32xf32, #tpu.memory_space<vmem>>, %arg7: memref<16x32xf32, #tpu.memory_space<vmem>>) attributes {dimension_semantics = [#tpu.dimension_semantics<parallel>, #tpu.dimension_semantics<parallel>, #tpu.dimension_semantics<arbitrary>], iteration_bounds = array<i64: 1, 1, 1>, scalar_prefetch = 0 : i64, scratch_operands = 1 : i64, tpu.core_type = #tpu.core_type<tc>, window_params = [{transform_indices = @transform_0, window_bounds = array<i64: 16, 32>}, {transform_indices = @transform_1, window_bounds = array<i64: 32, 32>}, {transform_indices = @transform_2, window_bounds = array<i64: 1, 32>}, {transform_indices = @transform_3, window_bounds = array<i64: 16, 32>}]} {
    %c0_i32 = arith.constant 0 : i32
    %0 = arith.cmpi eq, %arg2, %c0_i32 : i32
    %1 = arith.extui %0 : i1 to i32
    %c0_i32_0 = arith.constant 0 : i32
    %2 = arith.cmpi ne, %1, %c0_i32_0 : i32
    scf.if %2 {
      %cst_10 = arith.constant 0.000000e+00 : f32
      %12 = vector.broadcast %cst_10 : f32 to vector<16x32xf32>
      %c0_11 = arith.constant 0 : index
      %c0_12 = arith.constant 0 : index
      %13 = vector.load %arg7[%c0_11, %c0_12] : memref<16x32xf32, #tpu.memory_space<vmem>>, vector<16x32xf32>
      tpu.vector_store %arg7[%c0_11, %c0_12], %12 {strides = array<i32>} : memref<16x32xf32, #tpu.memory_space<vmem>>, vector<16x32xf32>,
    } else {
    }
    %c0 = arith.constant 0 : index
    %c0_1 = arith.constant 0 : index
    %3 = vector.load %arg7[%c0, %c0_1] : memref<16x32xf32, #tpu.memory_space<vmem>>, vector<16x32xf32>
    %c0_2 = arith.constant 0 : index
    %c0_3 = arith.constant 0 : index
    %4 = vector.load %arg3[%c0_2, %c0_3] : memref<16x32xf32, #tpu.memory_space<vmem>>, vector<16x32xf32>
    %c0_4 = arith.constant 0 : index
    %c0_5 = arith.constant 0 : index
    %5 = vector.load %arg4[%c0_4, %c0_5] : memref<32x32xf32, #tpu.memory_space<vmem>>, vector<32x32xf32>
    %cst = arith.constant dense<0.000000e+00> : vector<16x32xf32>
    %6 = tpu.matmul %4, %5, %cst {dimension_numbers = #tpu.dot_dimension_numbers<[1], [0], [0], [1], [0, 0, 1, 1], [], []>} : vector<16x32xf32>, vector<32x32xf32>, vector<16x32xf32> -> vector<16x32xf32>
    %7 = arith.addf %3, %6 : vector<16x32xf32>
    %c0_6 = arith.constant 0 : index
    %c0_7 = arith.constant 0 : index
    %8 = vector.load %arg7[%c0_6, %c0_7] : memref<16x32xf32, #tpu.memory_space<vmem>>, vector<16x32xf32>
    tpu.vector_store %arg7[%c0_6, %c0_7], %7 {strides = array<i32>} : memref<16x32xf32, #tpu.memory_space<vmem>>, vector<16x32xf32>,
    %c0_i32_8 = arith.constant 0 : i32
    %9 = arith.cmpi eq, %arg2, %c0_i32_8 : i32
    %10 = arith.extui %9 : i1 to i32
    %c0_i32_9 = arith.constant 0 : i32
    %11 = arith.cmpi ne, %10, %c0_i32_9 : i32
    scf.if %11 {
      %c0_10 = arith.constant 0 : index
      %c0_11 = arith.constant 0 : index
      %12 = vector.load %arg7[%c0_10, %c0_11] : memref<16x32xf32, #tpu.memory_space<vmem>>, vector<16x32xf32>
      %c0_12 = arith.constant 0 : index
      %c0_13 = arith.constant 0 : index
      %13 = vector.load %arg5[%c0_12, %c0_13] : memref<1x32xf32, #tpu.memory_space<vmem>>, vector<1x32xf32>
      %14 = vector.broadcast %13 : vector<1x32xf32> to vector<16x32xf32>
      %15 = arith.addf %12, %14 : vector<16x32xf32>
      %c0_14 = arith.constant 0 : index
      %c0_15 = arith.constant 0 : index
      %16 = vector.load %arg6[%c0_14, %c0_15] : memref<16x32xf32, #tpu.memory_space<vmem>>, vector<16x32xf32>
      tpu.vector_store %arg6[%c0_14, %c0_15], %15 {strides = array<i32>} : memref<16x32xf32, #tpu.memory_space<vmem>>, vector<16x32xf32>,
    } else {
    }
    return
  }
  func.func @transform_0(%arg0: i32, %arg1: i32, %arg2: i32) -> (i32, i32) {
    %c0_i32 = arith.constant 0 : i32
    return %arg0, %arg2 : i32, i32
  }
  func.func @transform_1(%arg0: i32, %arg1: i32, %arg2: i32) -> (i32, i32) {
    %c0_i32 = arith.constant 0 : i32
    return %arg2, %arg1 : i32, i32
  }
  func.func @transform_2(%arg0: i32, %arg1: i32, %arg2: i32) -> (i32, i32) {
    %c0_i32 = arith.constant 0 : i32
    %c0_i32_0 = arith.constant 0 : i32
    return %c0_i32, %arg1 : i32, i32
  }
  func.func @transform_3(%arg0: i32, %arg1: i32, %arg2: i32) -> (i32, i32) {
    %c0_i32 = arith.constant 0 : i32
    return %arg0, %arg1 : i32, i32
  }
}

module attributes {stable_mosaic.version = 11 : i64} {
  func.func @rope_kernel(%arg0: i32, %arg1: i32, %arg2: memref<1x8x4xf32, #tpu.memory_space<vmem>>, %arg3: memref<1x8x4xf32, #tpu.memory_space<vmem>>, %arg4: memref<8x4xf32, #tpu.memory_space<vmem>>, %arg5: memref<8x4xf32, #tpu.memory_space<vmem>>, %arg6: memref<1x8x4xf32, #tpu.memory_space<vmem>>, %arg7: memref<1x8x4xf32, #tpu.memory_space<vmem>>) attributes {dimension_semantics = [#tpu.dimension_semantics<parallel>, #tpu.dimension_semantics<parallel>], iteration_bounds = array<i64: 8, 1>, scalar_prefetch = 0 : i64, scratch_operands = 0 : i64, tpu.core_type = #tpu.core_type<tc>, window_params = [{transform_indices = @transform_0, window_bounds = array<i64: 1, 8, 4>}, {transform_indices = @transform_1, window_bounds = array<i64: 1, 8, 4>}, {transform_indices = @transform_2, window_bounds = array<i64: 8, 4>}, {transform_indices = @transform_3, window_bounds = array<i64: 8, 4>}, {transform_indices = @transform_4, window_bounds = array<i64: 1, 8, 4>}, {transform_indices = @transform_5, window_bounds = array<i64: 1, 8, 4>}]} {
    %c0 = arith.constant 0 : index
    %c0_0 = arith.constant 0 : index
    %c0_1 = arith.constant 0 : index
    %0 = vector.load %arg2[%c0, %c0_0, %c0_1] : memref<1x8x4xf32, #tpu.memory_space<vmem>>, vector<1x8x4xf32>
    %1 = vector.shape_cast %0 : vector<1x8x4xf32> to vector<8x4xf32>
    %c0_2 = arith.constant 0 : index
    %c0_3 = arith.constant 0 : index
    %c0_4 = arith.constant 0 : index
    %2 = vector.load %arg3[%c0_2, %c0_3, %c0_4] : memref<1x8x4xf32, #tpu.memory_space<vmem>>, vector<1x8x4xf32>
    %3 = vector.shape_cast %2 : vector<1x8x4xf32> to vector<8x4xf32>
    %c0_5 = arith.constant 0 : index
    %c0_6 = arith.constant 0 : index
    %4 = vector.load %arg4[%c0_5, %c0_6] : memref<8x4xf32, #tpu.memory_space<vmem>>, vector<8x4xf32>
    %c0_7 = arith.constant 0 : index
    %c0_8 = arith.constant 0 : index
    %5 = vector.load %arg5[%c0_7, %c0_8] : memref<8x4xf32, #tpu.memory_space<vmem>>, vector<8x4xf32>
    %6 = arith.mulf %1, %4 : vector<8x4xf32>
    %7 = arith.mulf %3, %5 : vector<8x4xf32>
    %8 = arith.subf %6, %7 : vector<8x4xf32>
    %c0_9 = arith.constant 0 : index
    %c0_10 = arith.constant 0 : index
    %c0_11 = arith.constant 0 : index
    %9 = vector.load %arg6[%c0_9, %c0_10, %c0_11] : memref<1x8x4xf32, #tpu.memory_space<vmem>>, vector<1x8x4xf32>
    %10 = vector.shape_cast %9 : vector<1x8x4xf32> to vector<8x4xf32>
    %11 = vector.shape_cast %8 : vector<8x4xf32> to vector<1x8x4xf32>
    tpu.vector_store %arg6[%c0_9, %c0_10, %c0_11], %11 {strides = array<i32>} : memref<1x8x4xf32, #tpu.memory_space<vmem>>, vector<1x8x4xf32>,
    %12 = arith.mulf %3, %4 : vector<8x4xf32>
    %13 = arith.mulf %1, %5 : vector<8x4xf32>
    %14 = arith.addf %12, %13 : vector<8x4xf32>
    %c0_12 = arith.constant 0 : index
    %c0_13 = arith.constant 0 : index
    %c0_14 = arith.constant 0 : index
    %15 = vector.load %arg7[%c0_12, %c0_13, %c0_14] : memref<1x8x4xf32, #tpu.memory_space<vmem>>, vector<1x8x4xf32>
    %16 = vector.shape_cast %15 : vector<1x8x4xf32> to vector<8x4xf32>
    %17 = vector.shape_cast %14 : vector<8x4xf32> to vector<1x8x4xf32>
    tpu.vector_store %arg7[%c0_12, %c0_13, %c0_14], %17 {strides = array<i32>} : memref<1x8x4xf32, #tpu.memory_space<vmem>>, vector<1x8x4xf32>,
    return
  }
  func.func @transform_0(%arg0: i32, %arg1: i32) -> (i32, i32, i32) {
    %c0_i32 = arith.constant 0 : i32
    %c0_i32_0 = arith.constant 0 : i32
    return %arg0, %arg1, %c0_i32 : i32, i32, i32
  }
  func.func @transform_1(%arg0: i32, %arg1: i32) -> (i32, i32, i32) {
    %c0_i32 = arith.constant 0 : i32
    %c0_i32_0 = arith.constant 0 : i32
    return %arg0, %arg1, %c0_i32 : i32, i32, i32
  }
  func.func @transform_2(%arg0: i32, %arg1: i32) -> (i32, i32) {
    %c0_i32 = arith.constant 0 : i32
    %c0_i32_0 = arith.constant 0 : i32
    return %arg1, %c0_i32 : i32, i32
  }
  func.func @transform_3(%arg0: i32, %arg1: i32) -> (i32, i32) {
    %c0_i32 = arith.constant 0 : i32
    %c0_i32_0 = arith.constant 0 : i32
    return %arg1, %c0_i32 : i32, i32
  }
  func.func @transform_4(%arg0: i32, %arg1: i32) -> (i32, i32, i32) {
    %c0_i32 = arith.constant 0 : i32
    %c0_i32_0 = arith.constant 0 : i32
    return %arg0, %arg1, %c0_i32 : i32, i32, i32
  }
  func.func @transform_5(%arg0: i32, %arg1: i32) -> (i32, i32, i32) {
    %c0_i32 = arith.constant 0 : i32
    %c0_i32_0 = arith.constant 0 : i32
    return %arg0, %arg1, %c0_i32 : i32, i32, i32
  }
}

module attributes {stable_mosaic.version = 11 : i64} {
  func.func @flash_attn_kernel(%arg0: i32, %arg1: i32, %arg2: i32, %arg3: memref<1x8x8xf32, #tpu.memory_space<vmem>>, %arg4: memref<1x8x8xf32, #tpu.memory_space<vmem>>, %arg5: memref<1x8x8xf32, #tpu.memory_space<vmem>>, %arg6: memref<1x8x8xf32, #tpu.memory_space<vmem>>, %arg7: memref<8x1xf32, #tpu.memory_space<vmem>>, %arg8: memref<8x1xf32, #tpu.memory_space<vmem>>, %arg9: memref<8x8xf32, #tpu.memory_space<vmem>>) attributes {dimension_semantics = [#tpu.dimension_semantics<parallel>, #tpu.dimension_semantics<parallel>, #tpu.dimension_semantics<arbitrary>], iteration_bounds = array<i64: 8, 1, 1>, scalar_prefetch = 0 : i64, scratch_operands = 3 : i64, tpu.core_type = #tpu.core_type<tc>, window_params = [{transform_indices = @transform_0, window_bounds = array<i64: 1, 8, 8>}, {transform_indices = @transform_1, window_bounds = array<i64: 1, 8, 8>}, {transform_indices = @transform_2, window_bounds = array<i64: 1, 8, 8>}, {transform_indices = @transform_3, window_bounds = array<i64: 1, 8, 8>}]} {
    %c0_i32 = arith.constant 0 : i32
    %0 = arith.cmpi eq, %arg2, %c0_i32 : i32
    %1 = arith.extui %0 : i1 to i32
    %c0_i32_0 = arith.constant 0 : i32
    %2 = arith.cmpi ne, %1, %c0_i32_0 : i32
    scf.if %2 {
      %cst_27 = arith.constant 0xFF800000 : f32
      %37 = vector.broadcast %cst_27 : f32 to vector<8x1xf32>
      %c0_28 = arith.constant 0 : index
      %c0_29 = arith.constant 0 : index
      %38 = vector.load %arg7[%c0_28, %c0_29] : memref<8x1xf32, #tpu.memory_space<vmem>>, vector<8x1xf32>
      tpu.vector_store %arg7[%c0_28, %c0_29], %37 {strides = array<i32>} : memref<8x1xf32, #tpu.memory_space<vmem>>, vector<8x1xf32>,
      %cst_30 = arith.constant 0.000000e+00 : f32
      %39 = vector.broadcast %cst_30 : f32 to vector<8x1xf32>
      %c0_31 = arith.constant 0 : index
      %c0_32 = arith.constant 0 : index
      %40 = vector.load %arg8[%c0_31, %c0_32] : memref<8x1xf32, #tpu.memory_space<vmem>>, vector<8x1xf32>
      tpu.vector_store %arg8[%c0_31, %c0_32], %39 {strides = array<i32>} : memref<8x1xf32, #tpu.memory_space<vmem>>, vector<8x1xf32>,
      %cst_33 = arith.constant 0.000000e+00 : f32
      %41 = vector.broadcast %cst_33 : f32 to vector<8x8xf32>
      %c0_34 = arith.constant 0 : index
      %c0_35 = arith.constant 0 : index
      %42 = vector.load %arg9[%c0_34, %c0_35] : memref<8x8xf32, #tpu.memory_space<vmem>>, vector<8x8xf32>
      tpu.vector_store %arg9[%c0_34, %c0_35], %41 {strides = array<i32>} : memref<8x8xf32, #tpu.memory_space<vmem>>, vector<8x8xf32>,
    } else {
    }
    %c0 = arith.constant 0 : index
    %c0_1 = arith.constant 0 : index
    %c0_2 = arith.constant 0 : index
    %3 = vector.load %arg3[%c0, %c0_1, %c0_2] : memref<1x8x8xf32, #tpu.memory_space<vmem>>, vector<1x8x8xf32>
    %4 = vector.shape_cast %3 : vector<1x8x8xf32> to vector<8x8xf32>
    %c0_3 = arith.constant 0 : index
    %c0_4 = arith.constant 0 : index
    %c0_5 = arith.constant 0 : index
    %5 = vector.load %arg4[%c0_3, %c0_4, %c0_5] : memref<1x8x8xf32, #tpu.memory_space<vmem>>, vector<1x8x8xf32>
    %6 = vector.shape_cast %5 : vector<1x8x8xf32> to vector<8x8xf32>
    %cst = arith.constant dense<0.000000e+00> : vector<8x8xf32>
    %7 = tpu.matmul %4, %6, %cst {dimension_numbers = #tpu.dot_dimension_numbers<[1], [1], [0], [0], [0, 0, 1, 0], [], []>} : vector<8x8xf32>, vector<8x8xf32>, vector<8x8xf32> -> vector<8x8xf32>
    %cst_6 = arith.constant 0.353553385 : f32
    %8 = vector.broadcast %cst_6 : f32 to vector<8x8xf32>
    %9 = arith.mulf %7, %8 : vector<8x8xf32>
    %c0_7 = arith.constant 0 : index
    %c0_8 = arith.constant 0 : index
    %10 = vector.load %arg7[%c0_7, %c0_8] : memref<8x1xf32, #tpu.memory_space<vmem>>, vector<8x1xf32>
    %cst_9 = arith.constant dense<0xFF800000> : vector<8xf32>
    %11 = vector.multi_reduction <maximumf>, %9, %cst_9 [1] : vector<8x8xf32> to vector<8xf32>
    %12 = vector.shape_cast %11 : vector<8xf32> to vector<8x1xf32>
    %13 = arith.maximumf %10, %12 : vector<8x1xf32>
    %14 = arith.subf %10, %13 : vector<8x1xf32>
    %15 = math.exp %14 : vector<8x1xf32>
    %16 = vector.broadcast %13 : vector<8x1xf32> to vector<8x8xf32>
    %17 = arith.subf %9, %16 : vector<8x8xf32>
    %18 = math.exp %17 : vector<8x8xf32>
    %c0_10 = arith.constant 0 : index
    %c0_11 = arith.constant 0 : index
    %19 = vector.load %arg8[%c0_10, %c0_11] : memref<8x1xf32, #tpu.memory_space<vmem>>, vector<8x1xf32>
    %20 = arith.mulf %15, %19 : vector<8x1xf32>
    %cst_12 = arith.constant dense<0.000000e+00> : vector<8xf32>
    %21 = vector.multi_reduction <add>, %18, %cst_12 [1] : vector<8x8xf32> to vector<8xf32>
    %22 = vector.shape_cast %21 : vector<8xf32> to vector<8x1xf32>
    %23 = arith.addf %20, %22 : vector<8x1xf32>
    %c0_13 = arith.constant 0 : index
    %c0_14 = arith.constant 0 : index
    %24 = vector.load %arg8[%c0_13, %c0_14] : memref<8x1xf32, #tpu.memory_space<vmem>>, vector<8x1xf32>
    tpu.vector_store %arg8[%c0_13, %c0_14], %23 {strides = array<i32>} : memref<8x1xf32, #tpu.memory_space<vmem>>, vector<8x1xf32>,
    %c0_15 = arith.constant 0 : index
    %c0_16 = arith.constant 0 : index
    %25 = vector.load %arg9[%c0_15, %c0_16] : memref<8x8xf32, #tpu.memory_space<vmem>>, vector<8x8xf32>
    %26 = vector.broadcast %15 : vector<8x1xf32> to vector<8x8xf32>
    %27 = arith.mulf %26, %25 : vector<8x8xf32>
    %c0_17 = arith.constant 0 : index
    %c0_18 = arith.constant 0 : index
    %c0_19 = arith.constant 0 : index
    %28 = vector.load %arg5[%c0_17, %c0_18, %c0_19] : memref<1x8x8xf32, #tpu.memory_space<vmem>>, vector<1x8x8xf32>
    %29 = vector.shape_cast %28 : vector<1x8x8xf32> to vector<8x8xf32>
    %cst_20 = arith.constant dense<0.000000e+00> : vector<8x8xf32>
    %30 = tpu.matmul %18, %29, %cst_20 {dimension_numbers = #tpu.dot_dimension_numbers<[1], [0], [0], [1], [0, 0, 1, 1], [], []>} : vector<8x8xf32>, vector<8x8xf32>, vector<8x8xf32> -> vector<8x8xf32>
    %31 = arith.addf %27, %30 : vector<8x8xf32>
    %c0_21 = arith.constant 0 : index
    %c0_22 = arith.constant 0 : index
    %32 = vector.load %arg9[%c0_21, %c0_22] : memref<8x8xf32, #tpu.memory_space<vmem>>, vector<8x8xf32>
    tpu.vector_store %arg9[%c0_21, %c0_22], %31 {strides = array<i32>} : memref<8x8xf32, #tpu.memory_space<vmem>>, vector<8x8xf32>,
    %c0_23 = arith.constant 0 : index
    %c0_24 = arith.constant 0 : index
    %33 = vector.load %arg7[%c0_23, %c0_24] : memref<8x1xf32, #tpu.memory_space<vmem>>, vector<8x1xf32>
    tpu.vector_store %arg7[%c0_23, %c0_24], %13 {strides = array<i32>} : memref<8x1xf32, #tpu.memory_space<vmem>>, vector<8x1xf32>,
    %c0_i32_25 = arith.constant 0 : i32
    %34 = arith.cmpi eq, %arg2, %c0_i32_25 : i32
    %35 = arith.extui %34 : i1 to i32
    %c0_i32_26 = arith.constant 0 : i32
    %36 = arith.cmpi ne, %35, %c0_i32_26 : i32
    scf.if %36 {
      %c0_27 = arith.constant 0 : index
      %c0_28 = arith.constant 0 : index
      %37 = vector.load %arg9[%c0_27, %c0_28] : memref<8x8xf32, #tpu.memory_space<vmem>>, vector<8x8xf32>
      %c0_29 = arith.constant 0 : index
      %c0_30 = arith.constant 0 : index
      %38 = vector.load %arg8[%c0_29, %c0_30] : memref<8x1xf32, #tpu.memory_space<vmem>>, vector<8x1xf32>
      %39 = vector.broadcast %38 : vector<8x1xf32> to vector<8x8xf32>
      %40 = arith.divf %37, %39 : vector<8x8xf32>
      %c0_31 = arith.constant 0 : index
      %c0_32 = arith.constant 0 : index
      %c0_33 = arith.constant 0 : index
      %41 = vector.load %arg6[%c0_31, %c0_32, %c0_33] : memref<1x8x8xf32, #tpu.memory_space<vmem>>, vector<1x8x8xf32>
      %42 = vector.shape_cast %41 : vector<1x8x8xf32> to vector<8x8xf32>
      %43 = vector.shape_cast %40 : vector<8x8xf32> to vector<1x8x8xf32>
      tpu.vector_store %arg6[%c0_31, %c0_32, %c0_33], %43 {strides = array<i32>} : memref<1x8x8xf32, #tpu.memory_space<vmem>>, vector<1x8x8xf32>,
    } else {
    }
    return
  }
  func.func @transform_0(%arg0: i32, %arg1: i32, %arg2: i32) -> (i32, i32, i32) {
    %c0_i32 = arith.constant 0 : i32
    %c0_i32_0 = arith.constant 0 : i32
    return %arg0, %arg1, %c0_i32 : i32, i32, i32
  }
  func.func @transform_1(%arg0: i32, %arg1: i32, %arg2: i32) -> (i32, i32, i32) {
    %c0_i32 = arith.constant 0 : i32
    %c0_i32_0 = arith.constant 0 : i32
    return %arg0, %arg2, %c0_i32 : i32, i32, i32
  }
  func.func @transform_2(%arg0: i32, %arg1: i32, %arg2: i32) -> (i32, i32, i32) {
    %c0_i32 = arith.constant 0 : i32
    %c0_i32_0 = arith.constant 0 : i32
    return %arg0, %arg2, %c0_i32 : i32, i32, i32
  }
  func.func @transform_3(%arg0: i32, %arg1: i32, %arg2: i32) -> (i32, i32, i32) {
    %c0_i32 = arith.constant 0 : i32
    %c0_i32_0 = arith.constant 0 : i32
    return %arg0, %arg1, %c0_i32 : i32, i32, i32
  }
}

module attributes {stable_mosaic.version = 11 : i64} {
  func.func @linear_kernel(%arg0: i32, %arg1: i32, %arg2: i32, %arg3: memref<16x32xf32, #tpu.memory_space<vmem>>, %arg4: memref<32x32xf32, #tpu.memory_space<vmem>>, %arg5: memref<1x32xf32, #tpu.memory_space<vmem>>, %arg6: memref<16x32xf32, #tpu.memory_space<vmem>>, %arg7: memref<16x32xf32, #tpu.memory_space<vmem>>) attributes {dimension_semantics = [#tpu.dimension_semantics<parallel>, #tpu.dimension_semantics<parallel>, #tpu.dimension_semantics<arbitrary>], iteration_bounds = array<i64: 1, 1, 1>, scalar_prefetch = 0 : i64, scratch_operands = 1 : i64, tpu.core_type = #tpu.core_type<tc>, window_params = [{transform_indices = @transform_0, window_bounds = array<i64: 16, 32>}, {transform_indices = @transform_1, window_bounds = array<i64: 32, 32>}, {transform_indices = @transform_2, window_bounds = array<i64: 1, 32>}, {transform_indices = @transform_3, window_bounds = array<i64: 16, 32>}]} {
    %c0_i32 = arith.constant 0 : i32
    %0 = arith.cmpi eq, %arg2, %c0_i32 : i32
    %1 = arith.extui %0 : i1 to i32
    %c0_i32_0 = arith.constant 0 : i32
    %2 = arith.cmpi ne, %1, %c0_i32_0 : i32
    scf.if %2 {
      %cst_10 = arith.constant 0.000000e+00 : f32
      %12 = vector.broadcast %cst_10 : f32 to vector<16x32xf32>
      %c0_11 = arith.constant 0 : index
      %c0_12 = arith.constant 0 : index
      %13 = vector.load %arg7[%c0_11, %c0_12] : memref<16x32xf32, #tpu.memory_space<vmem>>, vector<16x32xf32>
      tpu.vector_store %arg7[%c0_11, %c0_12], %12 {strides = array<i32>} : memref<16x32xf32, #tpu.memory_space<vmem>>, vector<16x32xf32>,
    } else {
    }
    %c0 = arith.constant 0 : index
    %c0_1 = arith.constant 0 : index
    %3 = vector.load %arg7[%c0, %c0_1] : memref<16x32xf32, #tpu.memory_space<vmem>>, vector<16x32xf32>
    %c0_2 = arith.constant 0 : index
    %c0_3 = arith.constant 0 : index
    %4 = vector.load %arg3[%c0_2, %c0_3] : memref<16x32xf32, #tpu.memory_space<vmem>>, vector<16x32xf32>
    %c0_4 = arith.constant 0 : index
    %c0_5 = arith.constant 0 : index
    %5 = vector.load %arg4[%c0_4, %c0_5] : memref<32x32xf32, #tpu.memory_space<vmem>>, vector<32x32xf32>
    %cst = arith.constant dense<0.000000e+00> : vector<16x32xf32>
    %6 = tpu.matmul %4, %5, %cst {dimension_numbers = #tpu.dot_dimension_numbers<[1], [0], [0], [1], [0, 0, 1, 1], [], []>} : vector<16x32xf32>, vector<32x32xf32>, vector<16x32xf32> -> vector<16x32xf32>
    %7 = arith.addf %3, %6 : vector<16x32xf32>
    %c0_6 = arith.constant 0 : index
    %c0_7 = arith.constant 0 : index
    %8 = vector.load %arg7[%c0_6, %c0_7] : memref<16x32xf32, #tpu.memory_space<vmem>>, vector<16x32xf32>
    tpu.vector_store %arg7[%c0_6, %c0_7], %7 {strides = array<i32>} : memref<16x32xf32, #tpu.memory_space<vmem>>, vector<16x32xf32>,
    %c0_i32_8 = arith.constant 0 : i32
    %9 = arith.cmpi eq, %arg2, %c0_i32_8 : i32
    %10 = arith.extui %9 : i1 to i32
    %c0_i32_9 = arith.constant 0 : i32
    %11 = arith.cmpi ne, %10, %c0_i32_9 : i32
    scf.if %11 {
      %c0_10 = arith.constant 0 : index
      %c0_11 = arith.constant 0 : index
      %12 = vector.load %arg7[%c0_10, %c0_11] : memref<16x32xf32, #tpu.memory_space<vmem>>, vector<16x32xf32>
      %c0_12 = arith.constant 0 : index
      %c0_13 = arith.constant 0 : index
      %13 = vector.load %arg5[%c0_12, %c0_13] : memref<1x32xf32, #tpu.memory_space<vmem>>, vector<1x32xf32>
      %14 = vector.broadcast %13 : vector<1x32xf32> to vector<16x32xf32>
      %15 = arith.addf %12, %14 : vector<16x32xf32>
      %c0_14 = arith.constant 0 : index
      %c0_15 = arith.constant 0 : index
      %16 = vector.load %arg6[%c0_14, %c0_15] : memref<16x32xf32, #tpu.memory_space<vmem>>, vector<16x32xf32>
      tpu.vector_store %arg6[%c0_14, %c0_15], %15 {strides = array<i32>} : memref<16x32xf32, #tpu.memory_space<vmem>>, vector<16x32xf32>,
    } else {
    }
    return
  }
  func.func @transform_0(%arg0: i32, %arg1: i32, %arg2: i32) -> (i32, i32) {
    %c0_i32 = arith.constant 0 : i32
    return %arg0, %arg2 : i32, i32
  }
  func.func @transform_1(%arg0: i32, %arg1: i32, %arg2: i32) -> (i32, i32) {
    %c0_i32 = arith.constant 0 : i32
    return %arg2, %arg1 : i32, i32
  }
  func.func @transform_2(%arg0: i32, %arg1: i32, %arg2: i32) -> (i32, i32) {
    %c0_i32 = arith.constant 0 : i32
    %c0_i32_0 = arith.constant 0 : i32
    return %c0_i32, %arg1 : i32, i32
  }
  func.func @transform_3(%arg0: i32, %arg1: i32, %arg2: i32) -> (i32, i32) {
    %c0_i32 = arith.constant 0 : i32
    return %arg0, %arg1 : i32, i32
  }
}

</mosaic_0001>

<llo_original>
// kernel: llama_attention.8
$region0: #{llama_attention.8}
  #allocation0 [shape = 'u32[]', space=smem, size = 0x4, offset = 0x4, fixed_abs, tag = 'smem constant byte address 0x4 - core index']
  #allocation1 [shape = 'u32[72,128]{1,0:T(1,128)}', space=vmem, size = 0x9000, scoped, tag = 'internal scratch']
  #allocation2 [shape = 'f32[16,32]{1,0:T(8,128)}', space=vmem, size = 0x2000, scoped, tag = 'scratch operand']
  %s0 = inlined_call_operand.vmem [shape: f32[16,32], index: 0, kind: input, shape index: {}]
  %s1 = inlined_call_operand.vmem [shape: f32[32,32], index: 1, kind: input, shape index: {}]
  %s2 = inlined_call_operand.vmem [shape: f32[1,32], index: 2, kind: input, shape index: {}]
  %s3 = inlined_call_operand.vmem [shape: f32[16,32], index: 3, kind: output, shape index: {}]
  %s4 = sld [smem:[#allocation0]]
  $region30: #{llama_attention.8} parent=0
    _
  %s6 = ssub.s32 1, %s4
  %s7 = scalar_select 0, %s6, %s4
  // Predicated region
  $region2: #{llama_attention.8} parent=0 // pred_check
    _
  $region3: #{llama_attention.8} parent=0 // pred_check_branch
    %9 = sbr.rel (0) target = $region5
  $region4: #{llama_attention.8} parent=0 // pred_region
    _
  $region5: #{llama_attention.8} parent=0 // pred_fallthru
    _
  // Predicated region
  $region6: #{llama_attention.8} parent=0 // pred_check
    _
  $region7: #{llama_attention.8} parent=0 // pred_check_branch
    %11 = sbr.rel (0) target = $region9
  $region8: #{llama_attention.8} parent=0 // pred_region
    _
  $region9: #{llama_attention.8} parent=0 // pred_fallthru
    _
  // Predicated region
  $region10: #{llama_attention.8} parent=0 // pred_check
    _
  $region11: #{llama_attention.8} parent=0 // pred_check_branch
    %13 = sbr.rel (0) target = $region13
  $region12: #{llama_attention.8} parent=0 // pred_region
    _
  $region13: #{llama_attention.8} parent=0 // pred_fallthru
    _
  %p14 = scmp.eq.s32.totalorder 0, 0
  // Predicated region
  $region14: #{llama_attention.8} parent=0 // pred_check
    %p15 = pneg %p14
  $region15: #{llama_attention.8} parent=0 // pred_check_branch
    %17 = sbr.rel (%p15) target = $region17
  $region16: #{llama_attention.8} parent=0 // pred_region
    %vm18 = vcmask 261120
    %19 = vst.msk [vmem:[#allocation2] sm:$0xff] %vm18, 0.0
    %20 = vst.msk [vmem:[#allocation2 + $0x8] sm:$0xff] %vm18, 0.0
  $region17: #{llama_attention.8} parent=0 // pred_fallthru
    _
  %v21 = vld [vmem:[#allocation2] sm:$0xff]
  %v22 = vld [vmem:[#allocation2 + $0x8] sm:$0xff]
  %v23 = vld [vmem:[%s0] sm:$0xff]
  %v24 = vld [vmem:[%s0 + $0x8] sm:$0xff]
  %v25 = vld [vmem:[%s1] sm:$0xff]
  %v26 = vld [vmem:[%s1 + $0x8] sm:$0xff]
  %v27 = vld [vmem:[%s1 + $0x10] sm:$0xff]
  %v28 = vld [vmem:[%s1 + $0x18] sm:$0xff]
  %vm29 = vcmask 261120
  %v31 = vsel %vm29, %v23, 0
  %v34 = vsel %vm29, %v24, 0
  %36 = vmatpush.msra.mxu0 0.0
  %37 = vmatpush.msra.mxu0 0.0
  %38 = vmatpush.msra.mxu0 0.0
  %39 = vmatpush.msra.mxu0 0.0
  %40 = vmatpush.msra.mxu0 0.0
  %41 = vmatpush.msra.mxu0 0.0
  %42 = vmatpush.msra.mxu0 0.0
  %43 = vmatpush.msra.mxu0 0.0
  %44 = vmatpush.msra.mxu0 0.0
  %45 = vmatpush.msra.mxu0 0.0
  %46 = vmatpush.msra.mxu0 0.0
  %47 = vmatpush.msra.mxu0 0.0
  %48 = vmatpush.msra.mxu0 %v28
  %49 = vmatpush.msra.mxu0 %v27
  %50 = vmatpush.msra.mxu0 %v26
  %51 = vmatpush.msra.mxu0 %v25
  %52 = vmatmul.f32.gmra.mxu0 %v31
  %v53 = vpop.f32.mrf.mxu0
  %v54 = vadd.f32 0.0, %v53
  %55 = vmatmul.f32.gmra.mxu0 %v34
  %v56 = vpop.f32.mrf.mxu0
  %v57 = vadd.f32 0.0, %v56
  %58 = vdwg.mxu0
  %v59 = vadd.f32 %v21, %v54
  %v60 = vadd.f32 %v22, %v57
  %61 = vst.msk [vmem:[#allocation2] sm:$0xff] %vm29, %v59
  %62 = vst.msk [vmem:[#allocation2 + $0x8] sm:$0xff] %vm29, %v60
  // Predicated region
  $region18: #{llama_attention.8} parent=0 // pred_check
    %p63 = pneg %p14
  $region19: #{llama_attention.8} parent=0 // pred_check_branch
    %65 = sbr.rel (%p63) target = $region21
  $region20: #{llama_attention.8} parent=0 // pred_region
    %v66 = vld [vmem:[#allocation2] sm:$0xff]
    %v67 = vld [vmem:[#allocation2 + $0x8] sm:$0xff]
    %v68 = vld [vmem:[%s2] sm:$0x1]
    %v70 = vperm.slane %v68, 0
    %v72 = vadd.f32 %v66, %v70
    %v73 = vadd.f32 %v67, %v70
    %74 = vst.msk [vmem:[%s3] sm:$0xff] %vm29, %v72
    %75 = vst.msk [vmem:[%s3 + $0x8] sm:$0xff] %vm29, %v73
  $region21: #{llama_attention.8} parent=0 // pred_fallthru
    _
  // Predicated region
  $region22: #{llama_attention.8} parent=0 // pred_check
    _
  $region23: #{llama_attention.8} parent=0 // pred_check_branch
    %77 = sbr.rel (0) target = $region25
  $region24: #{llama_attention.8} parent=0 // pred_region
    _
  $region25: #{llama_attention.8} parent=0 // pred_fallthru
    _
  // Predicated region
  $region26: #{llama_attention.8} parent=0 // pred_check
    _
  $region27: #{llama_attention.8} parent=0 // pred_check_branch
    %79 = sbr.rel (0) target = $region29
  $region28: #{llama_attention.8} parent=0 // pred_region
    _
  $region29: #{llama_attention.8} parent=0 // pred_fallthru
    _

// kernel: llama_attention.11
$region0: #{llama_attention.11}
  #allocation0 [shape = 'u32[]', space=smem, size = 0x4, offset = 0x4, fixed_abs, tag = 'smem constant byte address 0x4 - core index']
  #allocation1 [shape = 'u32[72,128]{1,0:T(1,128)}', space=vmem, size = 0x9000, scoped, tag = 'internal scratch']
  %s0 = inlined_call_operand.vmem [shape: f32[8,8,4], index: 0, kind: input, shape index: {}]
  %s1 = inlined_call_operand.vmem [shape: f32[8,8,4], index: 1, kind: input, shape index: {}]
  %s2 = inlined_call_operand.vmem [shape: f32[8,4], index: 2, kind: input, shape index: {}]
  %s3 = inlined_call_operand.vmem [shape: f32[8,4], index: 3, kind: input, shape index: {}]
  %s4 = inlined_call_operand.vmem [shape: f32[8,8,4], index: 4, kind: output, shape index: {0}]
  %s5 = inlined_call_operand.vmem [shape: f32[8,8,4], index: 5, kind: output, shape index: {1}]
  %6 = xla_tuple %s4, %s5
  %s7 = sld [smem:[#allocation0]]
  $region57: #{llama_attention.11} parent=0
    _
  %s9 = ssub.s32 1, %s7
  %s10 = scalar_select 0, %s9, %s7
  loop: start=0, step=1, limit=10
  $region2: #{llama_attention.11} parent=0 // loop_pre_header
    _
  $region3: #{llama_attention.11} parent=0 // loop_header
    %s12 = sphi 0, %s16
    %p13 = scmp.ge.s32.totalorder %s12, 10
    %s19 = sphi 0, %s31
    %s20 = sphi 0, %s27
    %s21 = sphi 0, %s19
    %s22 = sphi 0, %s20
    %s23 = sphi 0, %s21
    %s24 = sphi 0, %s22
    %s36 = sphi 0, %s38
    %s39 = sphi 0, %s36
    %s40 = sphi 0, %s39
    %s56 = sphi 0, %s40
    %s64 = sphi 0, %s66
    %s67 = sphi 0, %s64
    %s68 = sphi 0, %s67
    %s84 = sphi 0, %s68
    %s90 = sphi 0, %s92
    %s93 = sphi 0, %s90
    %s94 = sphi 0, %s93
    %s110 = sphi 0, %s94
    %s116 = sphi 0, %s118
    %s119 = sphi 0, %s116
    %s120 = sphi 0, %s119
    %s136 = sphi 0, %s120
    %s144 = sphi 0, %s146
    %s147 = sphi 0, %s144
    %s148 = sphi 0, %s147
    %s164 = sphi 0, %s148
    %s172 = sphi 0, %s174
    %s175 = sphi 0, %s172
    %s176 = sphi 0, %s175
    %s192 = sphi 0, %s176
  $region4: #{llama_attention.11} parent=0 // loop_header_branch
    %15 = sbr.rel (%p13) target = $region8
  $region5: #{llama_attention.11} parent=0 // loop_body
    %s17 = ssub.s32 %s12, 1
    %s18 = ssub.s32 %s12, 2
    %s25 = sadd.s32 1, %s20
    %p26 = scmp.ge.s32.totalorder %s25, 1
    %s27 = scalar_select %p26, 0, %s25
    %s28 = sadd.s32 1, %s19
    %s29 = scalar_select %p26, %s28, %s19
    %p30 = scmp.ge.s32.totalorder %s29, 8
    %s31 = scalar_select %p30, 0, %s29
    %s32 = ssub.s32 %s19, %s31
    %s33 = ssub.s32 %s20, %s27
    %s34 = sor.u32 %s32, %s33
    %p35 = scmp.eq.s32.totalorder %s34, 0
    %s37 = sadd.s32 %s36, 1
    %s38 = scalar_select %p35, %s36, %s37
    %p41 = pneg %p35
    %p42 = scmp.eq.s32.totalorder %s12, 7
    %p43 = por %p41, %p42
    %p44 = scmp.ne.s32.totalorder %s36, %s39
    %p45 = scmp.eq.s32.totalorder %s12, 0
    %p46 = por %p44, %p45
    %p47 = scmp.ne.s32.totalorder %s36, %s39
    %p48 = scmp.eq.s32.totalorder %s17, 7
    %p49 = por %p47, %p48
    %p50 = scmp.ne.s32.totalorder %s39, %s40
    %p51 = scmp.eq.s32.totalorder %s17, 0
    %p52 = por %p50, %p51
    %p53 = scmp.ne.s32.totalorder %s39, %s40
    %p54 = scmp.eq.s32.totalorder %s18, 7
    %p55 = por %p53, %p54
    %p57 = scmp.ne.s32.totalorder %s40, %s56
    %p58 = scmp.eq.s32.totalorder %s18, 0
    %p59 = por %p57, %p58
    %s60 = ssub.s32 %s19, %s31
    %s61 = ssub.s32 %s20, %s27
    %s62 = sor.u32 %s60, %s61
    %p63 = scmp.eq.s32.totalorder %s62, 0
    %s65 = sadd.s32 %s64, 1
    %s66 = scalar_select %p63, %s64, %s65
    %p69 = pneg %p63
    %p70 = scmp.eq.s32.totalorder %s12, 7
    %p71 = por %p69, %p70
    %p72 = scmp.ne.s32.totalorder %s64, %s67
    %p73 = scmp.eq.s32.totalorder %s12, 0
    %p74 = por %p72, %p73
    %p75 = scmp.ne.s32.totalorder %s64, %s67
    %p76 = scmp.eq.s32.totalorder %s17, 7
    %p77 = por %p75, %p76
    %p78 = scmp.ne.s32.totalorder %s67, %s68
    %p79 = scmp.eq.s32.totalorder %s17, 0
    %p80 = por %p78, %p79
    %p81 = scmp.ne.s32.totalorder %s67, %s68
    %p82 = scmp.eq.s32.totalorder %s18, 7
    %p83 = por %p81, %p82
    %p85 = scmp.ne.s32.totalorder %s68, %s84
    %p86 = scmp.eq.s32.totalorder %s18, 0
    %p87 = por %p85, %p86
    %s88 = ssub.s32 %s20, %s27
    %p89 = scmp.eq.s32.totalorder %s88, 0
    %s91 = sadd.s32 %s90, 1
    %s92 = scalar_select %p89, %s90, %s91
    %p95 = pneg %p89
    %p96 = scmp.eq.s32.totalorder %s12, 7
    %p97 = por %p95, %p96
    %p98 = scmp.ne.s32.totalorder %s90, %s93
    %p99 = scmp.eq.s32.totalorder %s12, 0
    %p100 = por %p98, %p99
    %p101 = scmp.ne.s32.totalorder %s90, %s93
    %p102 = scmp.eq.s32.totalorder %s17, 7
    %p103 = por %p101, %p102
    %p104 = scmp.ne.s32.totalorder %s93, %s94
    %p105 = scmp.eq.s32.totalorder %s17, 0
    %p106 = por %p104, %p105
    %p107 = scmp.ne.s32.totalorder %s93, %s94
    %p108 = scmp.eq.s32.totalorder %s18, 7
    %p109 = por %p107, %p108
    %p111 = scmp.ne.s32.totalorder %s94, %s110
    %p112 = scmp.eq.s32.totalorder %s18, 0
    %p113 = por %p111, %p112
    %s114 = ssub.s32 %s20, %s27
    %p115 = scmp.eq.s32.totalorder %s114, 0
    %s117 = sadd.s32 %s116, 1
    %s118 = scalar_select %p115, %s116, %s117
    %p121 = pneg %p115
    %p122 = scmp.eq.s32.totalorder %s12, 7
    %p123 = por %p121, %p122
    %p124 = scmp.ne.s32.totalorder %s116, %s119
    %p125 = scmp.eq.s32.totalorder %s12, 0
    %p126 = por %p124, %p125
    %p127 = scmp.ne.s32.totalorder %s116, %s119
    %p128 = scmp.eq.s32.totalorder %s17, 7
    %p129 = por %p127, %p128
    %p130 = scmp.ne.s32.totalorder %s119, %s120
    %p131 = scmp.eq.s32.totalorder %s17, 0
    %p132 = por %p130, %p131
    %p133 = scmp.ne.s32.totalorder %s119, %s120
    %p134 = scmp.eq.s32.totalorder %s18, 7
    %p135 = por %p133, %p134
    %p137 = scmp.ne.s32.totalorder %s120, %s136
    %p138 = scmp.eq.s32.totalorder %s18, 0
    %p139 = por %p137, %p138
    %s140 = ssub.s32 %s19, %s31
    %s141 = ssub.s32 %s20, %s27
    %s142 = sor.u32 %s140, %s141
    %p143 = scmp.eq.s32.totalorder %s142, 0
    %s145 = sadd.s32 %s144, 1
    %s146 = scalar_select %p143, %s144, %s145
    %p149 = pneg %p143
    %p150 = scmp.eq.s32.totalorder %s12, 7
    %p151 = por %p149, %p150
    %p152 = scmp.ne.s32.totalorder %s144, %s147
    %p153 = scmp.eq.s32.totalorder %s12, 0
    %p154 = por %p152, %p153
    %p155 = scmp.ne.s32.totalorder %s144, %s147
    %p156 = scmp.eq.s32.totalorder %s17, 7
    %p157 = por %p155, %p156
    %p158 = scmp.ne.s32.totalorder %s147, %s148
    %p159 = scmp.eq.s32.totalorder %s17, 0
    %p160 = por %p158, %p159
    %p161 = scmp.ne.s32.totalorder %s147, %s148
    %p162 = scmp.eq.s32.totalorder %s18, 7
    %p163 = por %p161, %p162
    %p165 = scmp.ne.s32.totalorder %s148, %s164
    %p166 = scmp.eq.s32.totalorder %s18, 0
    %p167 = por %p165, %p166
    %s168 = ssub.s32 %s19, %s31
    %s169 = ssub.s32 %s20, %s27
    %s170 = sor.u32 %s168, %s169
    %p171 = scmp.eq.s32.totalorder %s170, 0
    %s173 = sadd.s32 %s172, 1
    %s174 = scalar_select %p171, %s172, %s173
    %p177 = pneg %p171
    %p178 = scmp.eq.s32.totalorder %s12, 7
    %p179 = por %p177, %p178
    %p180 = scmp.ne.s32.totalorder %s172, %s175
    %p181 = scmp.eq.s32.totalorder %s12, 0
    %p182 = por %p180, %p181
    %p183 = scmp.ne.s32.totalorder %s172, %s175
    %p184 = scmp.eq.s32.totalorder %s17, 7
    %p185 = por %p183, %p184
    %p186 = scmp.ne.s32.totalorder %s175, %s176
    %p187 = scmp.eq.s32.totalorder %s17, 0
    %p188 = por %p186, %p187
    %p189 = scmp.ne.s32.totalorder %s175, %s176
    %p190 = scmp.eq.s32.totalorder %s18, 7
    %p191 = por %p189, %p190
    %p193 = scmp.ne.s32.totalorder %s176, %s192
    %p194 = scmp.eq.s32.totalorder %s18, 0
    %p195 = por %p193, %p194
    %p196 = scmp.le.s32.totalorder 1, %s12
    %p197 = scmp.lt.s32.totalorder %s12, 9
    %p198 = pnand %p196, %p197
    %p199 = pneg %p198
    // Predicated region
    $region9: #{llama_attention.11} parent=5 // pred_check
      _
    $region10: #{llama_attention.11} parent=5 // pred_check_branch
      %201 = sbr.rel (%p198) target = $region12
    $region11: #{llama_attention.11} parent=5 // pred_region
      %s202 = ssub.s32 %s12, 1
      // Predicated region
      $region13: #{llama_attention.11} parent=11 // pred_check
        %p203 = pneg %p106
      $region14: #{llama_attention.11} parent=11 // pred_check_branch
        %205 = sbr.rel (%p203) target = $region16
      $region15: #{llama_attention.11} parent=11 // pred_region
        %p206 = scmp.lt.s32.totalorder %s22, 0
        %s207 = scalar_select %p206, %s22, 0
        %s208 = smul.addr %s207, 8
        %s209 = scalar_lea.vmem %s2, %s208
      $region16: #{llama_attention.11} parent=11 // pred_fallthru
        _
      // Predicated region
      $region17: #{llama_attention.11} parent=11 // pred_check
        %p210 = pneg %p132
      $region18: #{llama_attention.11} parent=11 // pred_check_branch
        %212 = sbr.rel (%p210) target = $region20
      $region19: #{llama_attention.11} parent=11 // pred_region
        %p213 = scmp.lt.s32.totalorder %s22, 0
        %s214 = scalar_select %p213, %s22, 0
        %s215 = smul.addr %s214, 8
        %s216 = scalar_lea.vmem %s3, %s215
      $region20: #{llama_attention.11} parent=11 // pred_fallthru
        _
    $region12: #{llama_attention.11} parent=5 // pred_fallthru
      _
    %p217 = scmp.lt.s32.totalorder %s12, 8
    // Predicated region
    $region21: #{llama_attention.11} parent=5 // pred_check
      %p218 = pneg %p217
    $region22: #{llama_attention.11} parent=5 // pred_check_branch
      %220 = sbr.rel (%p218) target = $region24
    $region23: #{llama_attention.11} parent=5 // pred_region
      // Predicated region
      $region25: #{llama_attention.11} parent=23 // pred_check
        %p221 = pneg %p46
      $region26: #{llama_attention.11} parent=23 // pred_check_branch
        %223 = sbr.rel (%p221) target = $region28
      $region27: #{llama_attention.11} parent=23 // pred_region
        %p224 = scmp.lt.s32.totalorder %s19, 7
        %s225 = scalar_select %p224, %s19, 7
        %p226 = scmp.lt.s32.totalorder %s20, 0
        %s227 = scalar_select %p226, %s20, 0
        %s228 = sadd.s32 %s227, %s225
        %s229 = smul.addr %s228, 8
        %s230 = scalar_lea.vmem %s0, %s229
      $region28: #{llama_attention.11} parent=23 // pred_fallthru
        _
      // Predicated region
      $region29: #{llama_attention.11} parent=23 // pred_check
        %p231 = pneg %p74
      $region30: #{llama_attention.11} parent=23 // pred_check_branch
        %233 = sbr.rel (%p231) target = $region32
      $region31: #{llama_attention.11} parent=23 // pred_region
        %p234 = scmp.lt.s32.totalorder %s19, 7
        %s235 = scalar_select %p234, %s19, 7
        %p236 = scmp.lt.s32.totalorder %s20, 0
        %s237 = scalar_select %p236, %s20, 0
        %s238 = sadd.s32 %s237, %s235
        %s239 = smul.addr %s238, 8
        %s240 = scalar_lea.vmem %s1, %s239
      $region32: #{llama_attention.11} parent=23 // pred_fallthru
        _
    $region24: #{llama_attention.11} parent=5 // pred_fallthru
      _
    %p241 = scmp.le.s32.totalorder 1, %s12
    %p242 = scmp.lt.s32.totalorder %s12, 9
    %p243 = pnand %p241, %p242
    %p244 = pneg %p243
    // Predicated region
    $region33: #{llama_attention.11} parent=5 // pred_check
      _
    $region34: #{llama_attention.11} parent=5 // pred_check_branch
      %246 = sbr.rel (%p243) target = $region36
    $region35: #{llama_attention.11} parent=5 // pred_region
      %s247 = ssub.s32 %s12, 1
      %p248 = scmp.lt.s32.totalorder %s21, 7
      %s249 = scalar_select %p248, %s21, 7
      %p250 = scmp.lt.s32.totalorder %s22, 0
      %s251 = scalar_select %p250, %s22, 0
      %s252 = sadd.s32 %s251, %s249
      %s253 = smul.addr %s252, 8
      %s254 = scalar_lea.vmem %s0, %s253
      %p255 = pneg %p52
      %p256 = pneg %p49
      %p257 = scmp.lt.s32.totalorder %s21, 7
      %s258 = scalar_select %p257, %s21, 7
      %p259 = scmp.lt.s32.totalorder %s22, 0
      %s260 = scalar_select %p259, %s22, 0
      %s261 = sadd.s32 %s260, %s258
      %s262 = smul.addr %s261, 8
      %s263 = scalar_lea.vmem %s1, %s262
      %p264 = pneg %p80
      %p265 = pneg %p77
      %p266 = scmp.lt.s32.totalorder %s22, 0
      %s267 = scalar_select %p266, %s22, 0
      %s268 = smul.addr %s267, 8
      %s269 = scalar_lea.vmem %s2, %s268
      %p270 = pneg %p106
      %p271 = pneg %p103
      %p272 = scmp.lt.s32.totalorder %s22, 0
      %s273 = scalar_select %p272, %s22, 0
      %s274 = smul.addr %s273, 8
      %s275 = scalar_lea.vmem %s3, %s274
      %p276 = pneg %p132
      %p277 = pneg %p129
      %p278 = pneg %p160
      %p279 = pneg %p157
      %p280 = scmp.lt.s32.totalorder %s21, 7
      %s281 = scalar_select %p280, %s21, 7
      %p282 = scmp.lt.s32.totalorder %s22, 0
      %s283 = scalar_select %p282, %s22, 0
      %s284 = sadd.s32 %s283, %s281
      %s285 = smul.addr %s284, 8
      %s286 = scalar_lea.vmem %s4, %s285
      %p287 = pneg %p188
      %p288 = pneg %p185
      %p289 = scmp.lt.s32.totalorder %s21, 7
      %s290 = scalar_select %p289, %s21, 7
      %p291 = scmp.lt.s32.totalorder %s22, 0
      %s292 = scalar_select %p291, %s22, 0
      %s293 = sadd.s32 %s292, %s290
      %s294 = smul.addr %s293, 8
      %s295 = scalar_lea.vmem %s5, %s294
      %p296 = scmp.lt.s32.totalorder %s21, 7
      %s297 = scalar_select %p296, %s21, 7
      %p298 = scmp.lt.s32.totalorder %s22, 0
      %s299 = scalar_select %p298, %s22, 0
      %s300 = sadd.s32 %s299, %s297
      %s301 = smul.addr %s300, 8
      %s302 = scalar_lea.vmem %s0, %s301
      %p303 = scmp.lt.s32.totalorder %s21, 7
      %s304 = scalar_select %p303, %s21, 7
      %p305 = scmp.lt.s32.totalorder %s22, 0
      %s306 = scalar_select %p305, %s22, 0
      %s307 = sadd.s32 %s306, %s304
      %s308 = smul.addr %s307, 8
      %s309 = scalar_lea.vmem %s1, %s308
      %p310 = scmp.lt.s32.totalorder %s22, 0
      %s311 = scalar_select %p310, %s22, 0
      %s312 = smul.addr %s311, 8
      %s313 = scalar_lea.vmem %s2, %s312
      %p314 = scmp.lt.s32.totalorder %s22, 0
      %s315 = scalar_select %p314, %s22, 0
      %s316 = smul.addr %s315, 8
      %s317 = scalar_lea.vmem %s3, %s316
      %p318 = scmp.lt.s32.totalorder %s21, 7
      %s319 = scalar_select %p318, %s21, 7
      %p320 = scmp.lt.s32.totalorder %s22, 0
      %s321 = scalar_select %p320, %s22, 0
      %s322 = sadd.s32 %s321, %s319
      %s323 = smul.addr %s322, 8
      %s324 = scalar_lea.vmem %s4, %s323
      %p325 = scmp.lt.s32.totalorder %s21, 7
      %s326 = scalar_select %p325, %s21, 7
      %p327 = scmp.lt.s32.totalorder %s22, 0
      %s328 = scalar_select %p327, %s22, 0
      %s329 = sadd.s32 %s328, %s326
      %s330 = smul.addr %s329, 8
      %s331 = scalar_lea.vmem %s5, %s330
      %v332 = vld [vmem:[%s302] sm:$0xff]
      %v333 = vld [vmem:[%s309] sm:$0xff]
      %v334 = vld [vmem:[%s313] sm:$0xff]
      %v335 = vld [vmem:[%s317] sm:$0xff]
      %v336 = vmul.f32 %v332, %v334
      %v337 = vmul.f32 %v333, %v335
      %v338 = vsub.f32 %v336, %v337
      %vm339 = vcmask 31744
      %340 = vst.msk [vmem:[%s324] sm:$0xff] %vm339, %v338
      %v341 = vmul.f32 %v333, %v334
      %v342 = vmul.f32 %v332, %v335
      %v343 = vadd.f32 %v341, %v342
      %344 = vst.msk [vmem:[%s331] sm:$0xff] %vm339, %v343
      %p345 = scmp.lt.s32.totalorder %s21, 7
      %s346 = scalar_select %p345, %s21, 7
      %p347 = scmp.lt.s32.totalorder %s22, 0
      %s348 = scalar_select %p347, %s22, 0
      %s349 = sadd.s32 %s348, %s346
      %s350 = smul.addr %s349, 8
      %s351 = scalar_lea.vmem %s4, %s350
      %p352 = scmp.lt.s32.totalorder %s21, 7
      %s353 = scalar_select %p352, %s21, 7
      %p354 = scmp.lt.s32.totalorder %s22, 0
      %s355 = scalar_select %p354, %s22, 0
      %s356 = sadd.s32 %s355, %s353
      %s357 = smul.addr %s356, 8
      %s358 = scalar_lea.vmem %s5, %s357
      // Predicated region
      $region37: #{llama_attention.11} parent=35 // pred_check
        %p359 = pneg %p157
      $region38: #{llama_attention.11} parent=35 // pred_check_branch
        %361 = sbr.rel (%p359) target = $region40
      $region39: #{llama_attention.11} parent=35 // pred_region
        _
      $region40: #{llama_attention.11} parent=35 // pred_fallthru
        _
      // Predicated region
      $region41: #{llama_attention.11} parent=35 // pred_check
        %p362 = pneg %p185
      $region42: #{llama_attention.11} parent=35 // pred_check_branch
        %364 = sbr.rel (%p362) target = $region44
      $region43: #{llama_attention.11} parent=35 // pred_region
        _
      $region44: #{llama_attention.11} parent=35 // pred_fallthru
        _
    $region36: #{llama_attention.11} parent=5 // pred_fallthru
      _
    %p365 = scmp.le.s32.totalorder 2, %s12
    // Predicated region
    $region45: #{llama_attention.11} parent=5 // pred_check
      %p366 = pneg %p365
    $region46: #{llama_attention.11} parent=5 // pred_check_branch
      %368 = sbr.rel (%p366) target = $region48
    $region47: #{llama_attention.11} parent=5 // pred_region
      %s369 = ssub.s32 %s12, 2
      // Predicated region
      $region49: #{llama_attention.11} parent=47 // pred_check
        %p370 = pneg %p163
      $region50: #{llama_attention.11} parent=47 // pred_check_branch
        %372 = sbr.rel (%p370) target = $region52
      $region51: #{llama_attention.11} parent=47 // pred_region
        %p373 = scmp.lt.s32.totalorder %s23, 7
        %s374 = scalar_select %p373, %s23, 7
        %p375 = scmp.lt.s32.totalorder %s24, 0
        %s376 = scalar_select %p375, %s24, 0
        %s377 = sadd.s32 %s376, %s374
        %s378 = smul.addr %s377, 8
        %s379 = scalar_lea.vmem %s4, %s378
      $region52: #{llama_attention.11} parent=47 // pred_fallthru
        _
      // Predicated region
      $region53: #{llama_attention.11} parent=47 // pred_check
        %p380 = pneg %p191
      $region54: #{llama_attention.11} parent=47 // pred_check_branch
        %382 = sbr.rel (%p380) target = $region56
      $region55: #{llama_attention.11} parent=47 // pred_region
        %p383 = scmp.lt.s32.totalorder %s23, 7
        %s384 = scalar_select %p383, %s23, 7
        %p385 = scmp.lt.s32.totalorder %s24, 0
        %s386 = scalar_select %p385, %s24, 0
        %s387 = sadd.s32 %s386, %s384
        %s388 = smul.addr %s387, 8
        %s389 = scalar_lea.vmem %s5, %s388
      $region56: #{llama_attention.11} parent=47 // pred_fallthru
        _
    $region48: #{llama_attention.11} parent=5 // pred_fallthru
      _
  $region6: #{llama_attention.11} parent=0 // loop_footer
    %s16 = sadd.s32 1, %s12
  $region7: #{llama_attention.11} parent=0 // loop_footer_branch
    %11 = sbr.rel target = $region3
  $region8: #{llama_attention.11} parent=0 // loop_exit
    _

// kernel: llama_attention.12
$region0: #{llama_attention.12}
  #allocation0 [shape = 'u32[]', space=smem, size = 0x4, offset = 0x4, fixed_abs, tag = 'smem constant byte address 0x4 - core index']
  #allocation1 [shape = 'u32[72,128]{1,0:T(1,128)}', space=vmem, size = 0x9000, scoped, tag = 'internal scratch']
  #allocation2 [shape = 'f32[8,1]{1,0:T(8,128)}', space=vmem, size = 0x1000, scoped, tag = 'scratch operand']
  #allocation3 [shape = 'f32[8,1]{1,0:T(8,128)}', space=vmem, size = 0x1000, scoped, tag = 'scratch operand']
  #allocation4 [shape = 'f32[8,8]{1,0:T(8,128)}', space=vmem, size = 0x1000, scoped, tag = 'scratch operand']
  %s0 = inlined_call_operand.vmem [shape: f32[8,8,8], index: 0, kind: input, shape index: {}]
  %s1 = inlined_call_operand.vmem [shape: f32[8,8,8], index: 1, kind: input, shape index: {}]
  %s2 = inlined_call_operand.vmem [shape: f32[8,8,8], index: 2, kind: input, shape index: {}]
  %s3 = inlined_call_operand.vmem [shape: f32[8,8,8], index: 3, kind: output, shape index: {}]
  %s4 = sld [smem:[#allocation0]]
  $region53: #{llama_attention.12} parent=0
    _
  %s6 = ssub.s32 1, %s4
  %s7 = scalar_select 0, %s6, %s4
  loop: start=0, step=1, limit=10
  $region2: #{llama_attention.12} parent=0 // loop_pre_header
    _
  $region3: #{llama_attention.12} parent=0 // loop_header
    %s9 = sphi 0, %s13
    %p10 = scmp.ge.s32.totalorder %s9, 10
    %s16 = sphi 0, %s35
    %s17 = sphi 0, %s31
    %s18 = sphi 0, %s27
    %s19 = sphi 0, %s16
    %s20 = sphi 0, %s17
    %s21 = sphi 0, %s18
    %s22 = sphi 0, %s19
    %s23 = sphi 0, %s20
    %s24 = sphi 0, %s21
    %s40 = sphi 0, %s42
    %s43 = sphi 0, %s40
    %s44 = sphi 0, %s43
    %s60 = sphi 0, %s44
    %s68 = sphi 0, %s70
    %s71 = sphi 0, %s68
    %s72 = sphi 0, %s71
    %s88 = sphi 0, %s72
    %s96 = sphi 0, %s98
    %s99 = sphi 0, %s96
    %s100 = sphi 0, %s99
    %s116 = sphi 0, %s100
    %s124 = sphi 0, %s126
    %s127 = sphi 0, %s124
    %s128 = sphi 0, %s127
    %s144 = sphi 0, %s128
  $region4: #{llama_attention.12} parent=0 // loop_header_branch
    %12 = sbr.rel (%p10) target = $region8
  $region5: #{llama_attention.12} parent=0 // loop_body
    %s14 = ssub.s32 %s9, 1
    %s15 = ssub.s32 %s9, 2
    %s25 = sadd.s32 1, %s18
    %p26 = scmp.ge.s32.totalorder %s25, 1
    %s27 = scalar_select %p26, 0, %s25
    %s28 = sadd.s32 1, %s17
    %s29 = scalar_select %p26, %s28, %s17
    %p30 = scmp.ge.s32.totalorder %s29, 1
    %s31 = scalar_select %p30, 0, %s29
    %s32 = sadd.s32 1, %s16
    %s33 = scalar_select %p30, %s32, %s16
    %p34 = scmp.ge.s32.totalorder %s33, 8
    %s35 = scalar_select %p34, 0, %s33
    %s36 = ssub.s32 %s16, %s35
    %s37 = ssub.s32 %s17, %s31
    %s38 = sor.u32 %s36, %s37
    %p39 = scmp.eq.s32.totalorder %s38, 0
    %s41 = sadd.s32 %s40, 1
    %s42 = scalar_select %p39, %s40, %s41
    %p45 = pneg %p39
    %p46 = scmp.eq.s32.totalorder %s9, 7
    %p47 = por %p45, %p46
    %p48 = scmp.ne.s32.totalorder %s40, %s43
    %p49 = scmp.eq.s32.totalorder %s9, 0
    %p50 = por %p48, %p49
    %p51 = scmp.ne.s32.totalorder %s40, %s43
    %p52 = scmp.eq.s32.totalorder %s14, 7
    %p53 = por %p51, %p52
    %p54 = scmp.ne.s32.totalorder %s43, %s44
    %p55 = scmp.eq.s32.totalorder %s14, 0
    %p56 = por %p54, %p55
    %p57 = scmp.ne.s32.totalorder %s43, %s44
    %p58 = scmp.eq.s32.totalorder %s15, 7
    %p59 = por %p57, %p58
    %p61 = scmp.ne.s32.totalorder %s44, %s60
    %p62 = scmp.eq.s32.totalorder %s15, 0
    %p63 = por %p61, %p62
    %s64 = ssub.s32 %s16, %s35
    %s65 = ssub.s32 %s18, %s27
    %s66 = sor.u32 %s64, %s65
    %p67 = scmp.eq.s32.totalorder %s66, 0
    %s69 = sadd.s32 %s68, 1
    %s70 = scalar_select %p67, %s68, %s69
    %p73 = pneg %p67
    %p74 = scmp.eq.s32.totalorder %s9, 7
    %p75 = por %p73, %p74
    %p76 = scmp.ne.s32.totalorder %s68, %s71
    %p77 = scmp.eq.s32.totalorder %s9, 0
    %p78 = por %p76, %p77
    %p79 = scmp.ne.s32.totalorder %s68, %s71
    %p80 = scmp.eq.s32.totalorder %s14, 7
    %p81 = por %p79, %p80
    %p82 = scmp.ne.s32.totalorder %s71, %s72
    %p83 = scmp.eq.s32.totalorder %s14, 0
    %p84 = por %p82, %p83
    %p85 = scmp.ne.s32.totalorder %s71, %s72
    %p86 = scmp.eq.s32.totalorder %s15, 7
    %p87 = por %p85, %p86
    %p89 = scmp.ne.s32.totalorder %s72, %s88
    %p90 = scmp.eq.s32.totalorder %s15, 0
    %p91 = por %p89, %p90
    %s92 = ssub.s32 %s16, %s35
    %s93 = ssub.s32 %s18, %s27
    %s94 = sor.u32 %s92, %s93
    %p95 = scmp.eq.s32.totalorder %s94, 0
    %s97 = sadd.s32 %s96, 1
    %s98 = scalar_select %p95, %s96, %s97
    %p101 = pneg %p95
    %p102 = scmp.eq.s32.totalorder %s9, 7
    %p103 = por %p101, %p102
    %p104 = scmp.ne.s32.totalorder %s96, %s99
    %p105 = scmp.eq.s32.totalorder %s9, 0
    %p106 = por %p104, %p105
    %p107 = scmp.ne.s32.totalorder %s96, %s99
    %p108 = scmp.eq.s32.totalorder %s14, 7
    %p109 = por %p107, %p108
    %p110 = scmp.ne.s32.totalorder %s99, %s100
    %p111 = scmp.eq.s32.totalorder %s14, 0
    %p112 = por %p110, %p111
    %p113 = scmp.ne.s32.totalorder %s99, %s100
    %p114 = scmp.eq.s32.totalorder %s15, 7
    %p115 = por %p113, %p114
    %p117 = scmp.ne.s32.totalorder %s100, %s116
    %p118 = scmp.eq.s32.totalorder %s15, 0
    %p119 = por %p117, %p118
    %s120 = ssub.s32 %s16, %s35
    %s121 = ssub.s32 %s17, %s31
    %s122 = sor.u32 %s120, %s121
    %p123 = scmp.eq.s32.totalorder %s122, 0
    %s125 = sadd.s32 %s124, 1
    %s126 = scalar_select %p123, %s124, %s125
    %p129 = pneg %p123
    %p130 = scmp.eq.s32.totalorder %s9, 7
    %p131 = por %p129, %p130
    %p132 = scmp.ne.s32.totalorder %s124, %s127
    %p133 = scmp.eq.s32.totalorder %s9, 0
    %p134 = por %p132, %p133
    %p135 = scmp.ne.s32.totalorder %s124, %s127
    %p136 = scmp.eq.s32.totalorder %s14, 7
    %p137 = por %p135, %p136
    %p138 = scmp.ne.s32.totalorder %s127, %s128
    %p139 = scmp.eq.s32.totalorder %s14, 0
    %p140 = por %p138, %p139
    %p141 = scmp.ne.s32.totalorder %s127, %s128
    %p142 = scmp.eq.s32.totalorder %s15, 7
    %p143 = por %p141, %p142
    %p145 = scmp.ne.s32.totalorder %s128, %s144
    %p146 = scmp.eq.s32.totalorder %s15, 0
    %p147 = por %p145, %p146
    %p148 = scmp.le.s32.totalorder 1, %s9
    %p149 = scmp.lt.s32.totalorder %s9, 9
    %p150 = pnand %p148, %p149
    %p151 = pneg %p150
    // Predicated region
    $region9: #{llama_attention.12} parent=5 // pred_check
      _
    $region10: #{llama_attention.12} parent=5 // pred_check_branch
      %153 = sbr.rel (%p150) target = $region12
    $region11: #{llama_attention.12} parent=5 // pred_region
      %s154 = ssub.s32 %s9, 1
    $region12: #{llama_attention.12} parent=5 // pred_fallthru
      _
    %p155 = scmp.lt.s32.totalorder %s9, 8
    // Predicated region
    $region13: #{llama_attention.12} parent=5 // pred_check
      %p156 = pneg %p155
    $region14: #{llama_attention.12} parent=5 // pred_check_branch
      %158 = sbr.rel (%p156) target = $region16
    $region15: #{llama_attention.12} parent=5 // pred_region
      // Predicated region
      $region17: #{llama_attention.12} parent=15 // pred_check
        %p159 = pneg %p50
      $region18: #{llama_attention.12} parent=15 // pred_check_branch
        %161 = sbr.rel (%p159) target = $region20
      $region19: #{llama_attention.12} parent=15 // pred_region
        %p162 = scmp.lt.s32.totalorder %s16, 7
        %s163 = scalar_select %p162, %s16, 7
        %p164 = scmp.lt.s32.totalorder %s17, 0
        %s165 = scalar_select %p164, %s17, 0
        %s166 = sadd.s32 %s165, %s163
        %s167 = smul.addr %s166, 8
        %s168 = scalar_lea.vmem %s0, %s167
      $region20: #{llama_attention.12} parent=15 // pred_fallthru
        _
      // Predicated region
      $region21: #{llama_attention.12} parent=15 // pred_check
        %p169 = pneg %p78
      $region22: #{llama_attention.12} parent=15 // pred_check_branch
        %171 = sbr.rel (%p169) target = $region24
      $region23: #{llama_attention.12} parent=15 // pred_region
        %p172 = scmp.lt.s32.totalorder %s16, 7
        %s173 = scalar_select %p172, %s16, 7
        %p174 = scmp.lt.s32.totalorder %s18, 0
        %s175 = scalar_select %p174, %s18, 0
        %s176 = sadd.s32 %s175, %s173
        %s177 = smul.addr %s176, 8
        %s178 = scalar_lea.vmem %s1, %s177
      $region24: #{llama_attention.12} parent=15 // pred_fallthru
        _
      // Predicated region
      $region25: #{llama_attention.12} parent=15 // pred_check
        %p179 = pneg %p106
      $region26: #{llama_attention.12} parent=15 // pred_check_branch
        %181 = sbr.rel (%p179) target = $region28
      $region27: #{llama_attention.12} parent=15 // pred_region
        %p182 = scmp.lt.s32.totalorder %s16, 7
        %s183 = scalar_select %p182, %s16, 7
        %p184 = scmp.lt.s32.totalorder %s18, 0
        %s185 = scalar_select %p184, %s18, 0
        %s186 = sadd.s32 %s185, %s183
        %s187 = smul.addr %s186, 8
        %s188 = scalar_lea.vmem %s2, %s187
      $region28: #{llama_attention.12} parent=15 // pred_fallthru
        _
    $region16: #{llama_attention.12} parent=5 // pred_fallthru
      _
    %p189 = scmp.le.s32.totalorder 1, %s9
    %p190 = scmp.lt.s32.totalorder %s9, 9
    %p191 = pnand %p189, %p190
    %p192 = pneg %p191
    // Predicated region
    $region29: #{llama_attention.12} parent=5 // pred_check
      _
    $region30: #{llama_attention.12} parent=5 // pred_check_branch
      %194 = sbr.rel (%p191) target = $region32
    $region31: #{llama_attention.12} parent=5 // pred_region
      %s195 = ssub.s32 %s9, 1
      %p196 = scmp.lt.s32.totalorder %s19, 7
      %s197 = scalar_select %p196, %s19, 7
      %p198 = scmp.lt.s32.totalorder %s20, 0
      %s199 = scalar_select %p198, %s20, 0
      %s200 = sadd.s32 %s199, %s197
      %s201 = smul.addr %s200, 8
      %s202 = scalar_lea.vmem %s0, %s201
      %p203 = pneg %p56
      %p204 = pneg %p53
      %p205 = scmp.lt.s32.totalorder %s19, 7
      %s206 = scalar_select %p205, %s19, 7
      %p207 = scmp.lt.s32.totalorder %s21, 0
      %s208 = scalar_select %p207, %s21, 0
      %s209 = sadd.s32 %s208, %s206
      %s210 = smul.addr %s209, 8
      %s211 = scalar_lea.vmem %s1, %s210
      %p212 = pneg %p84
      %p213 = pneg %p81
      %p214 = scmp.lt.s32.totalorder %s19, 7
      %s215 = scalar_select %p214, %s19, 7
      %p216 = scmp.lt.s32.totalorder %s21, 0
      %s217 = scalar_select %p216, %s21, 0
      %s218 = sadd.s32 %s217, %s215
      %s219 = smul.addr %s218, 8
      %s220 = scalar_lea.vmem %s2, %s219
      %p221 = pneg %p112
      %p222 = pneg %p109
      %p223 = pneg %p140
      %p224 = pneg %p137
      %p225 = scmp.lt.s32.totalorder %s19, 7
      %s226 = scalar_select %p225, %s19, 7
      %p227 = scmp.lt.s32.totalorder %s20, 0
      %s228 = scalar_select %p227, %s20, 0
      %s229 = sadd.s32 %s228, %s226
      %s230 = smul.addr %s229, 8
      %s231 = scalar_lea.vmem %s3, %s230
      %p232 = scmp.lt.s32.totalorder %s19, 7
      %s233 = scalar_select %p232, %s19, 7
      %p234 = scmp.lt.s32.totalorder %s20, 0
      %s235 = scalar_select %p234, %s20, 0
      %s236 = sadd.s32 %s235, %s233
      %s237 = smul.addr %s236, 8
      %s238 = scalar_lea.vmem %s0, %s237
      %p239 = scmp.lt.s32.totalorder %s19, 7
      %s240 = scalar_select %p239, %s19, 7
      %p241 = scmp.lt.s32.totalorder %s21, 0
      %s242 = scalar_select %p241, %s21, 0
      %s243 = sadd.s32 %s242, %s240
      %s244 = smul.addr %s243, 8
      %s245 = scalar_lea.vmem %s1, %s244
      %p246 = scmp.lt.s32.totalorder %s19, 7
      %s247 = scalar_select %p246, %s19, 7
      %p248 = scmp.lt.s32.totalorder %s21, 0
      %s249 = scalar_select %p248, %s21, 0
      %s250 = sadd.s32 %s249, %s247
      %s251 = smul.addr %s250, 8
      %s252 = scalar_lea.vmem %s2, %s251
      %p253 = scmp.lt.s32.totalorder %s19, 7
      %s254 = scalar_select %p253, %s19, 7
      %p255 = scmp.lt.s32.totalorder %s20, 0
      %s256 = scalar_select %p255, %s20, 0
      %s257 = sadd.s32 %s256, %s254
      %s258 = smul.addr %s257, 8
      %s259 = scalar_lea.vmem %s3, %s258
      %p260 = scmp.eq.s32.totalorder %s21, 0
      // Predicated region
      $region33: #{llama_attention.12} parent=31 // pred_check
        %p261 = pneg %p260
      $region34: #{llama_attention.12} parent=31 // pred_check_branch
        %263 = sbr.rel (%p261) target = $region36
      $region35: #{llama_attention.12} parent=31 // pred_region
        %vm264 = vcmask 7168
        %265 = vst.msk [vmem:[#allocation2] sm:$0xff] %vm264, -inf
        %266 = vst.msk [vmem:[#allocation3] sm:$0xff] %vm264, 0.0
        %vm267 = vcmask 64512
        %268 = vst.msk [vmem:[#allocation4] sm:$0xff] %vm267, 0.0
      $region36: #{llama_attention.12} parent=31 // pred_fallthru
        _
      %v269 = vld [vmem:[%s238] sm:$0xff]
      %v270 = vld [vmem:[%s245] sm:$0xff]
      %vm271 = vcmask 64512
      %v273 = vsel %vm271, %v269, 0
      %v276 = vsel %vm271, %v270, 0
      %278 = vmatpush.xpose.msra.mxu0 0.0
      %279 = vmatpush.xpose.msra.mxu0 0.0
      %280 = vmatpush.xpose.msra.mxu0 0.0
      %281 = vmatpush.xpose.msra.mxu0 0.0
      %282 = vmatpush.xpose.msra.mxu0 0.0
      %283 = vmatpush.xpose.msra.mxu0 0.0
      %284 = vmatpush.xpose.msra.mxu0 0.0
      %285 = vmatpush.xpose.msra.mxu0 0.0
      %286 = vmatpush.xpose.msra.mxu0 0.0
      %287 = vmatpush.xpose.msra.mxu0 0.0
      %288 = vmatpush.xpose.msra.mxu0 0.0
      %289 = vmatpush.xpose.msra.mxu0 0.0
      %290 = vmatpush.xpose.msra.mxu0 0.0
      %291 = vmatpush.xpose.msra.mxu0 0.0
      %292 = vmatpush.xpose.msra.mxu0 0.0
      %293 = vmatpush.xpose.msra.mxu0 %v276
      %294 = vmatmul.f32.gmra.mxu0 %v273
      %v295 = vpop.f32.mrf.mxu0
      %v296 = vadd.f32 0.0, %v295
      %297 = vdwg.mxu0
      %v298 = vmul.f32 %v296, 0.35355338
      %v299 = vld [vmem:[#allocation2] sm:$0xff]
      %v300 = vsel %vm271, %v298, -inf
      %301 = vmax.xlane.f32.xlu0 %v300
      %v302 = vpop.xlane.xlu0 %301
      %v303 = vmax.f32 %v299, %v302
      %v304 = vsub.f32 %v299, %v303
      %v305 = vmul.f32 %v304, 1.442695
      %v306 = vpow.pop %v305
      %308 = vset.pattern.permute.xlu0 0
      %309 = vperm.xlu0 %308, %v303
      %v310 = vpop.permute.xlu0 %309
      %v312 = vsub.f32 %v298, %v310
      %v313 = vmul.f32 %v312, 1.442695
      %v314 = vpow.pop %v313
      %v315 = vld [vmem:[#allocation3] sm:$0xff]
      %v316 = vmul.f32 %v306, %v315
      %v317 = vsel %vm271, %v314, 0.0
      %318 = vadd.xlane.f32.xlu0 %v317
      %v319 = vpop.xlane.xlu0 %318
      %v320 = vadd.f32 %v316, %v319
      %vm321 = vcmask 7168
      %322 = vst.msk [vmem:[#allocation3] sm:$0xff] %vm321, %v320
      %v323 = vld [vmem:[#allocation4] sm:$0xff]
      %325 = vset.pattern.permute.xlu0 0
      %326 = vperm.xlu0 %325, %v306
      %v327 = vpop.permute.xlu0 %326
      %v329 = vmul.f32 %v327, %v323
      %v330 = vld [vmem:[%s252] sm:$0xff]
      %v332 = vsel %vm271, %v314, 0
      %334 = vmatpush.msra.mxu0 0.0
      %335 = vmatpush.msra.mxu0 0.0
      %336 = vmatpush.msra.mxu0 0.0
      %337 = vmatpush.msra.mxu0 0.0
      %338 = vmatpush.msra.mxu0 0.0
      %339 = vmatpush.msra.mxu0 0.0
      %340 = vmatpush.msra.mxu0 0.0
      %341 = vmatpush.msra.mxu0 0.0
      %342 = vmatpush.msra.mxu0 0.0
      %343 = vmatpush.msra.mxu0 0.0
      %344 = vmatpush.msra.mxu0 0.0
      %345 = vmatpush.msra.mxu0 0.0
      %346 = vmatpush.msra.mxu0 0.0
      %347 = vmatpush.msra.mxu0 0.0
      %348 = vmatpush.msra.mxu0 0.0
      %349 = vmatpush.msra.mxu0 %v330
      %350 = vmatmul.f32.gmra.mxu0 %v332
      %v351 = vpop.f32.mrf.mxu0
      %v352 = vadd.f32 0.0, %v351
      %353 = vdwg.mxu0
      %v354 = vadd.f32 %v329, %v352
      %355 = vst.msk [vmem:[#allocation4] sm:$0xff] %vm271, %v354
      %356 = vst.msk [vmem:[#allocation2] sm:$0xff] %vm321, %v303
      // Predicated region
      $region37: #{llama_attention.12} parent=31 // pred_check
        %p357 = pneg %p260
      $region38: #{llama_attention.12} parent=31 // pred_check_branch
        %359 = sbr.rel (%p357) target = $region40
      $region39: #{llama_attention.12} parent=31 // pred_region
        %v360 = vld [vmem:[#allocation4] sm:$0xff]
        %v361 = vld [vmem:[#allocation3] sm:$0xff]
        %363 = vset.pattern.permute.xlu0 0
        %364 = vperm.xlu0 %363, %v361
        %v365 = vpop.permute.xlu0 %364
        %v367 = vrcp.pop %v365
        %v368 = vmul.f32 %v365, %v367
        %v369 = vsub.f32 1.0, %v368
        %v370 = vmul.f32 %v367, %v369
        %v371 = vadd.f32 %v367, %v370
        %vm372 = vweird.f32 %v365
        %vm373 = vweird.f32 %v367
        %vm374 = vmor %vm372, %vm373
        %v375 = vsel %vm374, %v367, %v371
        %v376 = vand.u32 2147483647, %v365
        %vm377 = vcmp.eq.f32.partialorder %v376, 8.507059e+37
        %v378 = vand.u32 %v365, 2147483648
        %v379 = vor.u32 1.1754944e-38, %v378
        %v380 = vsel %vm377, %v379, %v375
        %v381 = vmul.f32 %v360, %v380
        %382 = vst.msk [vmem:[%s259] sm:$0xff] %vm271, %v381
      $region40: #{llama_attention.12} parent=31 // pred_fallthru
        _
      %p383 = scmp.lt.s32.totalorder %s19, 7
      %s384 = scalar_select %p383, %s19, 7
      %p385 = scmp.lt.s32.totalorder %s20, 0
      %s386 = scalar_select %p385, %s20, 0
      %s387 = sadd.s32 %s386, %s384
      %s388 = smul.addr %s387, 8
      %s389 = scalar_lea.vmem %s3, %s388
      // Predicated region
      $region41: #{llama_attention.12} parent=31 // pred_check
        %p390 = pneg %p137
      $region42: #{llama_attention.12} parent=31 // pred_check_branch
        %392 = sbr.rel (%p390) target = $region44
      $region43: #{llama_attention.12} parent=31 // pred_region
        _
      $region44: #{llama_attention.12} parent=31 // pred_fallthru
        _
    $region32: #{llama_attention.12} parent=5 // pred_fallthru
      _
    %p393 = scmp.le.s32.totalorder 2, %s9
    // Predicated region
    $region45: #{llama_attention.12} parent=5 // pred_check
      %p394 = pneg %p393
    $region46: #{llama_attention.12} parent=5 // pred_check_branch
      %396 = sbr.rel (%p394) target = $region48
    $region47: #{llama_attention.12} parent=5 // pred_region
      %s397 = ssub.s32 %s9, 2
      // Predicated region
      $region49: #{llama_attention.12} parent=47 // pred_check
        %p398 = pneg %p143
      $region50: #{llama_attention.12} parent=47 // pred_check_branch
        %400 = sbr.rel (%p398) target = $region52
      $region51: #{llama_attention.12} parent=47 // pred_region
        %p401 = scmp.lt.s32.totalorder %s22, 7
        %s402 = scalar_select %p401, %s22, 7
        %p403 = scmp.lt.s32.totalorder %s23, 0
        %s404 = scalar_select %p403, %s23, 0
        %s405 = sadd.s32 %s404, %s402
        %s406 = smul.addr %s405, 8
        %s407 = scalar_lea.vmem %s3, %s406
      $region52: #{llama_attention.12} parent=47 // pred_fallthru
        _
    $region48: #{llama_attention.12} parent=5 // pred_fallthru
      _
  $region6: #{llama_attention.12} parent=0 // loop_footer
    %s13 = sadd.s32 1, %s9
  $region7: #{llama_attention.12} parent=0 // loop_footer_branch
    %8 = sbr.rel target = $region3
  $region8: #{llama_attention.12} parent=0 // loop_exit
    _

// kernel: llama_attention.13
$region0: #{llama_attention.13}
  #allocation0 [shape = 'u32[]', space=smem, size = 0x4, offset = 0x4, fixed_abs, tag = 'smem constant byte address 0x4 - core index']
  #allocation1 [shape = 'u32[72,128]{1,0:T(1,128)}', space=vmem, size = 0x9000, scoped, tag = 'internal scratch']
  #allocation2 [shape = 'f32[16,32]{1,0:T(8,128)}', space=vmem, size = 0x2000, scoped, tag = 'scratch operand']
  %s0 = inlined_call_operand.vmem [shape: f32[16,32], index: 0, kind: input, shape index: {}]
  %s1 = inlined_call_operand.vmem [shape: f32[32,32], index: 1, kind: input, shape index: {}]
  %s2 = inlined_call_operand.vmem [shape: f32[1,32], index: 2, kind: input, shape index: {}]
  %s3 = inlined_call_operand.hbm [shape: f32[16,32], index: 3, kind: output, shape index: {}]
  %s4 = sld [smem:[#allocation0]]
  $region30: #{llama_attention.13} parent=0
    _
  %s6 = ssub.s32 1, %s4
  %s7 = scalar_select 0, %s6, %s4
  $region1: #{llama_attention.13} parent=0
    #allocation3 [shape = 'u8[8192]{0}', space=vmem, size = 0x2000, scoped, tag = 'output window, operand 0, single buffered']
    #allocation4 [shape = 's32[1]{0}', space=sflag, size = 0x4, scoped, tag = 'scoped memory for llama_attention.13']
    %8 = vsyncpa [#allocation4], 0
    // Predicated region
    $region2: #{llama_attention.13} parent=1 // pred_check
      _
    $region3: #{llama_attention.13} parent=1 // pred_check_branch
      %10 = sbr.rel (0) target = $region5
    $region4: #{llama_attention.13} parent=1 // pred_region
      _
    $region5: #{llama_attention.13} parent=1 // pred_fallthru
      _
    // Predicated region
    $region6: #{llama_attention.13} parent=1 // pred_check
      _
    $region7: #{llama_attention.13} parent=1 // pred_check_branch
      %12 = sbr.rel (0) target = $region9
    $region8: #{llama_attention.13} parent=1 // pred_region
      _
    $region9: #{llama_attention.13} parent=1 // pred_fallthru
      _
    // Predicated region
    $region10: #{llama_attention.13} parent=1 // pred_check
      _
    $region11: #{llama_attention.13} parent=1 // pred_check_branch
      %14 = sbr.rel (0) target = $region13
    $region12: #{llama_attention.13} parent=1 // pred_region
      _
    $region13: #{llama_attention.13} parent=1 // pred_fallthru
      _
    %p15 = scmp.eq.s32.totalorder 0, 0
    // Predicated region
    $region14: #{llama_attention.13} parent=1 // pred_check
      %p16 = pneg %p15
    $region15: #{llama_attention.13} parent=1 // pred_check_branch
      %18 = sbr.rel (%p16) target = $region17
    $region16: #{llama_attention.13} parent=1 // pred_region
      %vm19 = vcmask 261120
      %20 = vst.msk [vmem:[#allocation2] sm:$0xff] %vm19, 0.0
      %21 = vst.msk [vmem:[#allocation2 + $0x8] sm:$0xff] %vm19, 0.0
    $region17: #{llama_attention.13} parent=1 // pred_fallthru
      _
    %v22 = vld [vmem:[#allocation2] sm:$0xff]
    %v23 = vld [vmem:[#allocation2 + $0x8] sm:$0xff]
    %v24 = vld [vmem:[%s0] sm:$0xff]
    %v25 = vld [vmem:[%s0 + $0x8] sm:$0xff]
    %v26 = vld [vmem:[%s1] sm:$0xff]
    %v27 = vld [vmem:[%s1 + $0x8] sm:$0xff]
    %v28 = vld [vmem:[%s1 + $0x10] sm:$0xff]
    %v29 = vld [vmem:[%s1 + $0x18] sm:$0xff]
    %vm30 = vcmask 261120
    %v32 = vsel %vm30, %v24, 0
    %v35 = vsel %vm30, %v25, 0
    %37 = vmatpush.msra.mxu0 0.0
    %38 = vmatpush.msra.mxu0 0.0
    %39 = vmatpush.msra.mxu0 0.0
    %40 = vmatpush.msra.mxu0 0.0
    %41 = vmatpush.msra.mxu0 0.0
    %42 = vmatpush.msra.mxu0 0.0
    %43 = vmatpush.msra.mxu0 0.0
    %44 = vmatpush.msra.mxu0 0.0
    %45 = vmatpush.msra.mxu0 0.0
    %46 = vmatpush.msra.mxu0 0.0
    %47 = vmatpush.msra.mxu0 0.0
    %48 = vmatpush.msra.mxu0 0.0
    %49 = vmatpush.msra.mxu0 %v29
    %50 = vmatpush.msra.mxu0 %v28
    %51 = vmatpush.msra.mxu0 %v27
    %52 = vmatpush.msra.mxu0 %v26
    %53 = vmatmul.f32.gmra.mxu0 %v32
    %v54 = vpop.f32.mrf.mxu0
    %v55 = vadd.f32 0.0, %v54
    %56 = vmatmul.f32.gmra.mxu0 %v35
    %v57 = vpop.f32.mrf.mxu0
    %v58 = vadd.f32 0.0, %v57
    %59 = vdwg.mxu0
    %v60 = vadd.f32 %v22, %v55
    %v61 = vadd.f32 %v23, %v58
    %62 = vst.msk [vmem:[#allocation2] sm:$0xff] %vm30, %v60
    %63 = vst.msk [vmem:[#allocation2 + $0x8] sm:$0xff] %vm30, %v61
    // Predicated region
    $region18: #{llama_attention.13} parent=1 // pred_check
      %p64 = pneg %p15
    $region19: #{llama_attention.13} parent=1 // pred_check_branch
      %66 = sbr.rel (%p64) target = $region21
    $region20: #{llama_attention.13} parent=1 // pred_region
      %v67 = vld [vmem:[#allocation2] sm:$0xff]
      %v68 = vld [vmem:[#allocation2 + $0x8] sm:$0xff]
      %v69 = vld [vmem:[%s2] sm:$0x1]
      %v71 = vperm.slane %v69, 0
      %v73 = vadd.f32 %v67, %v71
      %v74 = vadd.f32 %v68, %v71
      %75 = vst.msk [vmem:[#allocation3] sm:$0xff] %vm30, %v73
      %76 = vst.msk [vmem:[#allocation3 + $0x8] sm:$0xff] %vm30, %v74
    $region21: #{llama_attention.13} parent=1 // pred_fallthru
      _
    // Predicated region
    $region22: #{llama_attention.13} parent=1 // pred_check
      _
    $region23: #{llama_attention.13} parent=1 // pred_check_branch
      %78 = sbr.rel (0) target = $region25
    $region24: #{llama_attention.13} parent=1 // pred_region
      %80 = vsyncadd [#allocation4], 0
      %s81 = sshll.u32 [#allocation3], 4
      %s82 = int_to_ptr.vmem [resolvable:$true] %s81
      %s83 = sshll.u32 %s3, 4
      %s84 = int_to_ptr.hbm [resolvable:$true] %s83
      %89 = dma.vmem_to_hbm [thread:$0]  %s82, 256, %s84, [#allocation4], 128, 128, 8
    $region25: #{llama_attention.13} parent=1 // pred_fallthru
      _
    // Predicated region
    $region26: #{llama_attention.13} parent=1 // pred_check
      _
    $region27: #{llama_attention.13} parent=1 // pred_check_branch
      %91 = sbr.rel (0) target = $region29
    $region28: #{llama_attention.13} parent=1 // pred_region
      %93 = dma.done [#allocation4], 256
    $region29: #{llama_attention.13} parent=1 // pred_fallthru
      _
    %94 = vsyncpa [#allocation4], 1

</llo_original>
